<compile_context>
chip_gen: v7x
topology: tpu7x:2x2x1
jax: 0.10.0
libtpu: 0.0.40
codegen_flags: <defaults>
</compile_context>

<pallas_src>
import jax
import jax.numpy as jnp
import numpy as np
from jax import lax
from jax.experimental import pallas as pl
from jax.experimental.pallas import tpu as pltpu  # noqa: F401  (not needed after stripping grid/scratch)

# ---------------- problem sizes (small, consistent with the module) ----------
B = 2            # batch
L = 8            # sequence length
D = 128          # dim_in (embed dim)
H = 4            # n_heads
DH = D // H      # head dim
F = 256          # dim_ffnn
NL = 2           # n_layer (Encoder stacks 2 copies of the encoder layer)
BL = B * L       # flattened (batch, seq) rows
HBL = H * BL     # head-packed attention columns
ALANES = 128     # lane-dense padded width for the returned attention weights
EPS = 1e-5       # LayerNorm eps (PyTorch default)


def _layer_norm(x, w, b):
    mu = jnp.mean(x, axis=-1, keepdims=True)
    xc = x - mu
    var = jnp.mean(xc * xc, axis=-1, keepdims=True)
    return xc * lax.rsqrt(var + EPS) * w + b


def encoder_kernel(
    x_ref,        # (BL, D)       f32   input activations (batch flattened into rows)
    wqkv_ref,     # (NL, D, 3D)   bf16  in_proj weight, (in,out) layout, Q cols pre-scaled
    bqkv_ref,     # (NL, 1, 3D)   f32   in_proj bias, Q segment pre-scaled
    wo_ref,       # (NL, D, D)    bf16  out_proj weight, (in,out)
    bo_ref,       # (NL, 1, D)    f32
    ln1_w_ref,    # (NL, 1, D)    f32
    ln1_b_ref,    # (NL, 1, D)    f32
    ln2_w_ref,    # (NL, 1, D)    f32
    ln2_b_ref,    # (NL, 1, D)    f32
    w1_ref,       # (NL, D, F)    bf16  ffnn.fc1 weight, (in,out)
    b1_ref,       # (NL, 1, F)    f32
    w2_ref,       # (NL, F, D)    bf16  ffnn.fc2 weight, (in,out)
    b2_ref,       # (NL, 1, D)    f32
    head_mask_ref,   # (HBL, D)   f32   1.0 where packed row's head owns the feature column
    score_bias_ref,  # (BL, HBL)  f32   0 for same-batch (per head block), -1e30 otherwise
    denom_ones_ref,  # (HBL, HBL) bf16  block-diagonal (BLxBL) ones per head
    attn_e_ref,      # (HBL, ALANES) bf16  (1/H) at column == (row % L), else 0
    out_ref,      # (BL, D)       f32   encoder output
    attn_ref,     # (BL, ALANES)  f32   lane-dense head-averaged attn of LAST layer
):
    f32 = jnp.float32
    bf16 = jnp.bfloat16
    cdims_nt = (((1,), (1,)), ((), ()))   # contract last dims: q @ k^T pattern

    x = x_ref[...]                                     # (BL, D) f32
    head_mask = head_mask_ref[...]                     # (HBL, D) f32
    score_bias = score_bias_ref[...]                   # (BL, HBL) f32

    for li in range(NL):                               # static loop over layers
        # ---------- fused QKV projection (one MXU matmul, M = B*L) ----------
        qkv = jnp.dot(x.astype(bf16), wqkv_ref[li],
                      preferred_element_type=f32) + bqkv_ref[li]           # (BL, 3D)
        q = qkv[:, 0 * D:1 * D]                        # scale already folded in
        k = qkv[:, 1 * D:2 * D]
        v = qkv[:, 2 * D:3 * D]

        # ---------- head-packed K / V: (HBL, D); row h*BL+j = head-h slice of token j
        kp = (jnp.concatenate([k] * H, axis=0) * head_mask).astype(bf16)
        vp = (jnp.concatenate([v] * H, axis=0) * head_mask).astype(bf16)

        # ---------- all heads + batches in ONE score matmul ----------
        s = lax.dot_general(q.astype(bf16), kp, cdims_nt,
                            preferred_element_type=f32)                    # (BL, HBL)
        s = s + score_bias
        s = s - jnp.max(s, axis=-1, keepdims=True)     # global row max: valid per-head stabilizer
        p = jnp.exp(s)                                 # masked columns underflow to exactly 0

        # per-head softmax denominators via one block-of-ones matmul, broadcast in place
        p16 = p.astype(bf16)
        denom = jnp.dot(p16, denom_ones_ref[...], preferred_element_type=f32)
        pn = p * pl.reciprocal(denom, approx=True)     # (BL, HBL) f32, normalized per head
        pn16 = pn.astype(bf16)

        # ---------- context for all heads in ONE matmul (vp masking routes heads to lanes)
        ctx = jnp.dot(pn16, vp, preferred_element_type=f32)                # (BL, D)

        # ---------- output projection ----------
        attn_out = jnp.dot(ctx.astype(bf16), wo_ref[li],
                           preferred_element_type=f32) + bo_ref[li]

        # ---------- residual + LayerNorm1 (dropout = identity in eval) ----------
        y = _layer_norm(x + attn_out, ln1_w_ref[li], ln1_b_ref[li])

        # ---------- FFN: fc1 -> ReLU -> fc2 (dropout = identity) ----------
        h1 = jnp.dot(y.astype(bf16), w1_ref[li],
                     preferred_element_type=f32) + b1_ref[li]              # (BL, F)
        h1 = jnp.maximum(h1, 0.0)
        ff = jnp.dot(h1.astype(bf16), w2_ref[li],
                     preferred_element_type=f32) + b2_ref[li]              # (BL, D)

        # ---------- residual + LayerNorm2 ----------
        x = _layer_norm(y + ff, ln2_w_ref[li], ln2_b_ref[li])

        # ---------- head-averaged attention weights: LAST layer only, lane-dense ----------
        if li == NL - 1:
            # off-batch probabilities are exactly 0, so a single matmul with the
            # constant extraction matrix recovers each row's own (L,) weights,
            # summed over heads and scaled by 1/H, padded to 128 lanes.
            attn_ref[...] = jnp.dot(pn16, attn_e_ref[...],
                                    preferred_element_type=f32)            # (BL, 128)

    out_ref[...] = x.astype(out_ref.dtype)


def encoder(x, prepped, consts):
    """x: (B, L, D) f32.  prepped / consts: outputs of prepare_params / make_constants."""
    x2 = x.reshape(BL, D)
    # No grid / BlockSpecs: single invocation, every operand lives whole in VMEM
    # (total footprint < 1 MiB), so no double-buffer pipeline machinery is built.
    out, attn_pad = pl.pallas_call(
        encoder_kernel,
        out_shape=(jax.ShapeDtypeStruct((BL, D), jnp.float32),
                   jax.ShapeDtypeStruct((BL, ALANES), jnp.float32)),
    )(x2, *prepped, *consts)
    return out.reshape(B, L, D), attn_pad[:, :L].reshape(B, L, L)


# ---------------- host-side, one-time parameter preparation -------------------
def prepare_params(layer_params):
    """Stack per-layer PyTorch-convention params on a leading layer axis,
    fold the 1/sqrt(DH) attention scale into the Q part of in_proj weight/bias,
    transpose all matmul weights to (in, out) layout, and cast them to bfloat16
    (biases / LayerNorm params stay f32)."""
    qscale = jnp.float32(1.0 / np.sqrt(DH))
    wqkv_l, bqkv_l = [], []
    for p in layer_params:
        wqkv, bqkv = p[0], p[1]                                    # (3D, D), (3D,)
        wqkv = jnp.concatenate([wqkv[:D] * qscale, wqkv[D:]], axis=0)
        bqkv = jnp.concatenate([bqkv[:D] * qscale, bqkv[D:]], axis=0)
        wqkv_l.append(wqkv.T)                                      # (D, 3D)
        bqkv_l.append(bqkv[None, :])
    stack = jnp.stack
    return (
        stack(wqkv_l).astype(jnp.bfloat16),                          # (NL, D, 3D)
        stack(bqkv_l),                                               # (NL, 1, 3D)
        stack([p[2].T for p in layer_params]).astype(jnp.bfloat16),  # (NL, D, D)
        stack([p[3][None, :] for p in layer_params]),                # (NL, 1, D)
        stack([p[4][None, :] for p in layer_params]),                # ln1 w
        stack([p[5][None, :] for p in layer_params]),                # ln1 b
        stack([p[6][None, :] for p in layer_params]),                # ln2 w
        stack([p[7][None, :] for p in layer_params]),                # ln2 b
        stack([p[8].T for p in layer_params]).astype(jnp.bfloat16),  # (NL, D, F)
        stack([p[9][None, :] for p in layer_params]),                # (NL, 1, F)
        stack([p[10].T for p in layer_params]).astype(jnp.bfloat16), # (NL, F, D)
        stack([p[11][None, :] for p in layer_params]),               # (NL, 1, D)
    )


def make_constants():
    """Static masks / packing matrices for the head-packed attention."""
    r = np.arange(HBL)
    d = np.arange(D)
    # 1 where packed row r (head = r // BL) owns feature column d (head = d // DH)
    head_mask = (r[:, None] // BL == d[None, :] // DH).astype(np.float32)       # (HBL, D)

    i = np.arange(BL)
    c = np.arange(HBL)
    same_batch = (i[:, None] // L) == ((c[None, :] % BL) // L)
    score_bias = np.where(same_batch, 0.0, -1e30).astype(np.float32)             # (BL, HBL)

    # block-diagonal (BL x BL) blocks of ones, one block per head
    denom_ones = (c[:, None] // BL == c[None, :] // BL).astype(np.float32)       # (HBL, HBL)

    t = np.arange(ALANES)
    attn_e = ((c[:, None] % L) == t[None, :]).astype(np.float32) * (1.0 / H)     # (HBL, 128)

    return (jnp.asarray(head_mask),
            jnp.asarray(score_bias),
            jnp.asarray(denom_ones, dtype=jnp.bfloat16),
            jnp.asarray(attn_e, dtype=jnp.bfloat16))


# ---------------- pure-JAX f32 reference (for sanity check) -------------------
def reference(x, layer_params):
    hp = lax.Precision.HIGHEST

    def ln(v, w, b):
        mu = jnp.mean(v, axis=-1, keepdims=True)
        var = jnp.mean((v - mu) ** 2, axis=-1, keepdims=True)
        return (v - mu) / jnp.sqrt(var + EPS) * w + b

    attn = None
    for (wqkv, bqkv, wo, bo, ln1w, ln1b, ln2w, ln2b, w1, b1, w2, b2) in layer_params:
        qkv = jnp.einsum("bld,ed->ble", x, wqkv, precision=hp) + bqkv
        q, k, v = jnp.split(qkv, 3, axis=-1)
        q = q.reshape(B, L, H, DH).transpose(0, 2, 1, 3)
        k = k.reshape(B, L, H, DH).transpose(0, 2, 1, 3)
        v = v.reshape(B, L, H, DH).transpose(0, 2, 1, 3)
        s = jnp.einsum("bhqd,bhkd->bhqk", q, k, precision=hp) / np.sqrt(DH)
        p = jax.nn.softmax(s, axis=-1)
        ctx = jnp.einsum("bhqk,bhkd->bhqd", p, v,
                         precision=hp).transpose(0, 2, 1, 3).reshape(B, L, D)
        attn_out = jnp.einsum("bld,ed->ble", ctx, wo, precision=hp) + bo
        y = ln(x + attn_out, ln1w, ln1b)
        h1 = jax.nn.relu(jnp.einsum("bld,fd->blf", y, w1, precision=hp) + b1)
        ff = jnp.einsum("blf,df->bld", h1, w2, precision=hp) + b2
        x = ln(y + ff, ln2w, ln2b)
        attn = jnp.mean(p, axis=1)
    return x, attn


# ---------------- deterministic parameter init --------------------------------
def init_params(key):
    params = []
    for lk in jax.random.split(key, NL):
        ks = jax.random.split(lk, 8)
        sc = 0.05
        wqkv = sc * jax.random.normal(ks[0], (3 * D, D), jnp.float32)
        bqkv = sc * jax.random.normal(ks[1], (3 * D,), jnp.float32)
        wo = sc * jax.random.normal(ks[2], (D, D), jnp.float32)
        bo = sc * jax.random.normal(ks[3], (D,), jnp.float32)
        ln1w = jnp.ones((D,), jnp.float32)
        ln1b = jnp.zeros((D,), jnp.float32)
        ln2w = jnp.ones((D,), jnp.float32)
        ln2b = jnp.zeros((D,), jnp.float32)
        w1 = sc * jax.random.normal(ks[4], (F, D), jnp.float32)
        b1 = sc * jax.random.normal(ks[5], (F,), jnp.float32)
        w2 = sc * jax.random.normal(ks[6], (D, F), jnp.float32)
        b2 = sc * jax.random.normal(ks[7], (D,), jnp.float32)
        params.append((wqkv, bqkv, wo, bo, ln1w, ln1b, ln2w, ln2b, w1, b1, w2, b2))
    return params


if __name__ == "__main__":
    key = jax.random.PRNGKey(0)
    k_x, k_p = jax.random.split(key)
    x = jax.random.normal(k_x, (B, L, D), jnp.float32)
    layer_params = init_params(k_p)

    prepped = prepare_params(layer_params)      # one-time host-side transform
    consts = make_constants()                   # static packing masks / matrices

    run = jax.jit(encoder)
    out, attn = run(x, prepped, consts)
    out = jax.block_until_ready(out)
    attn = jax.block_until_ready(attn)

    ref_out, ref_attn = reference(x, layer_params)
    # bf16 MXU operands + f32 accumulation -> ~1e-2-level deviation vs f32 reference.
    np.testing.assert_allclose(np.asarray(out), np.asarray(ref_out),
                               rtol=2e-2, atol=3e-2)
    np.testing.assert_allclose(np.asarray(attn), np.asarray(ref_attn),
                               rtol=2e-2, atol=2e-2)
    print("KERNEL_OK")
</pallas_src>

<mosaic_0001>
module attributes {stable_mosaic.version = 11 : i64} {
  func.func @encoder_kernel(%arg0: memref<16x128xf32, #tpu.memory_space<vmem>>, %arg1: memref<2x128x384xbf16, #tpu.memory_space<vmem>>, %arg2: memref<2x1x384xf32, #tpu.memory_space<vmem>>, %arg3: memref<2x128x128xbf16, #tpu.memory_space<vmem>>, %arg4: memref<2x1x128xf32, #tpu.memory_space<vmem>>, %arg5: memref<2x1x128xf32, #tpu.memory_space<vmem>>, %arg6: memref<2x1x128xf32, #tpu.memory_space<vmem>>, %arg7: memref<2x1x128xf32, #tpu.memory_space<vmem>>, %arg8: memref<2x1x128xf32, #tpu.memory_space<vmem>>, %arg9: memref<2x128x256xbf16, #tpu.memory_space<vmem>>, %arg10: memref<2x1x256xf32, #tpu.memory_space<vmem>>, %arg11: memref<2x256x128xbf16, #tpu.memory_space<vmem>>, %arg12: memref<2x1x128xf32, #tpu.memory_space<vmem>>, %arg13: memref<64x128xf32, #tpu.memory_space<vmem>>, %arg14: memref<16x64xf32, #tpu.memory_space<vmem>>, %arg15: memref<64x64xbf16, #tpu.memory_space<vmem>>, %arg16: memref<64x128xbf16, #tpu.memory_space<vmem>>, %arg17: memref<16x128xf32, #tpu.memory_space<vmem>>, %arg18: memref<16x128xf32, #tpu.memory_space<vmem>>) attributes {dimension_semantics = [], scalar_prefetch = 0 : i64, scratch_operands = 0 : i64, tpu.core_type = #tpu.core_type<tc>} {
    %c0 = arith.constant 0 : index
    %c0_0 = arith.constant 0 : index
    %0 = vector.load %arg0[%c0, %c0_0] : memref<16x128xf32, #tpu.memory_space<vmem>>, vector<16x128xf32>
    %c0_1 = arith.constant 0 : index
    %c0_2 = arith.constant 0 : index
    %1 = vector.load %arg13[%c0_1, %c0_2] : memref<64x128xf32, #tpu.memory_space<vmem>>, vector<64x128xf32>
    %c0_3 = arith.constant 0 : index
    %c0_4 = arith.constant 0 : index
    %2 = vector.load %arg14[%c0_3, %c0_4] : memref<16x64xf32, #tpu.memory_space<vmem>>, vector<16x64xf32>
    %3 = arith.truncf %0 : vector<16x128xf32> to vector<16x128xbf16>
    %c0_5 = arith.constant 0 : index
    %c0_6 = arith.constant 0 : index
    %c0_7 = arith.constant 0 : index
    %4 = vector.load %arg1[%c0_5, %c0_6, %c0_7] : memref<2x128x384xbf16, #tpu.memory_space<vmem>>, vector<1x128x384xbf16>
    %5 = vector.shape_cast %4 : vector<1x128x384xbf16> to vector<128x384xbf16>
    %cst = arith.constant dense<0.000000e+00> : vector<16x384xf32>
    %6 = tpu.matmul %3, %5, %cst {dimension_numbers = #tpu.dot_dimension_numbers<[1], [0], [0], [1], [0, 0, 1, 1], [], []>} : vector<16x128xbf16>, vector<128x384xbf16>, vector<16x384xf32> -> vector<16x384xf32>
    %c0_8 = arith.constant 0 : index
    %c0_9 = arith.constant 0 : index
    %c0_10 = arith.constant 0 : index
    %7 = vector.load %arg2[%c0_8, %c0_9, %c0_10] : memref<2x1x384xf32, #tpu.memory_space<vmem>>, vector<1x1x384xf32>
    %8 = vector.shape_cast %7 : vector<1x1x384xf32> to vector<1x384xf32>
    %9 = vector.broadcast %8 : vector<1x384xf32> to vector<16x384xf32>
    %10 = arith.addf %6, %9 : vector<16x384xf32>
    %11 = vector.extract_strided_slice %10 {offsets = [0, 0], sizes = [16, 128], strides = [1, 1]} : vector<16x384xf32> to vector<16x128xf32>
    %12 = vector.extract_strided_slice %10 {offsets = [0, 128], sizes = [16, 128], strides = [1, 1]} : vector<16x384xf32> to vector<16x128xf32>
    %13 = vector.extract_strided_slice %10 {offsets = [0, 256], sizes = [16, 128], strides = [1, 1]} : vector<16x384xf32> to vector<16x128xf32>
    %14 = tpu.concatenate %12, %12, %12, %12 in 0 : vector<16x128xf32>, vector<16x128xf32>, vector<16x128xf32>, vector<16x128xf32> -> vector<64x128xf32>
    %15 = arith.mulf %14, %1 : vector<64x128xf32>
    %16 = arith.truncf %15 : vector<64x128xf32> to vector<64x128xbf16>
    %17 = tpu.concatenate %13, %13, %13, %13 in 0 : vector<16x128xf32>, vector<16x128xf32>, vector<16x128xf32>, vector<16x128xf32> -> vector<64x128xf32>
    %18 = arith.mulf %17, %1 : vector<64x128xf32>
    %19 = arith.truncf %18 : vector<64x128xf32> to vector<64x128xbf16>
    %20 = arith.truncf %11 : vector<16x128xf32> to vector<16x128xbf16>
    %cst_11 = arith.constant dense<0.000000e+00> : vector<16x64xf32>
    %21 = tpu.matmul %20, %16, %cst_11 {dimension_numbers = #tpu.dot_dimension_numbers<[1], [1], [0], [0], [0, 0, 1, 0], [], []>} : vector<16x128xbf16>, vector<64x128xbf16>, vector<16x64xf32> -> vector<16x64xf32>
    %22 = arith.addf %21, %2 : vector<16x64xf32>
    %cst_12 = arith.constant dense<0xFF800000> : vector<16xf32>
    %23 = vector.multi_reduction <maximumf>, %22, %cst_12 [1] : vector<16x64xf32> to vector<16xf32>
    %24 = vector.shape_cast %23 : vector<16xf32> to vector<16x1xf32>
    %25 = vector.broadcast %24 : vector<16x1xf32> to vector<16x64xf32>
    %26 = arith.subf %22, %25 : vector<16x64xf32>
    %27 = math.exp %26 : vector<16x64xf32>
    %28 = arith.truncf %27 : vector<16x64xf32> to vector<16x64xbf16>
    %c0_13 = arith.constant 0 : index
    %c0_14 = arith.constant 0 : index
    %29 = vector.load %arg15[%c0_13, %c0_14] : memref<64x64xbf16, #tpu.memory_space<vmem>>, vector<64x64xbf16>
    %cst_15 = arith.constant dense<0.000000e+00> : vector<16x64xf32>
    %30 = tpu.matmul %28, %29, %cst_15 {dimension_numbers = #tpu.dot_dimension_numbers<[1], [0], [0], [1], [0, 0, 1, 1], [], []>} : vector<16x64xbf16>, vector<64x64xbf16>, vector<16x64xf32> -> vector<16x64xf32>
    %31 = tpu.reciprocal %30 {approx = true} : vector<16x64xf32> -> vector<16x64xf32>
    %32 = arith.mulf %27, %31 : vector<16x64xf32>
    %33 = arith.truncf %32 : vector<16x64xf32> to vector<16x64xbf16>
    %cst_16 = arith.constant dense<0.000000e+00> : vector<16x128xf32>
    %34 = tpu.matmul %33, %19, %cst_16 {dimension_numbers = #tpu.dot_dimension_numbers<[1], [0], [0], [1], [0, 0, 1, 1], [], []>} : vector<16x64xbf16>, vector<64x128xbf16>, vector<16x128xf32> -> vector<16x128xf32>
    %35 = arith.truncf %34 : vector<16x128xf32> to vector<16x128xbf16>
    %c0_17 = arith.constant 0 : index
    %c0_18 = arith.constant 0 : index
    %c0_19 = arith.constant 0 : index
    %36 = vector.load %arg3[%c0_17, %c0_18, %c0_19] : memref<2x128x128xbf16, #tpu.memory_space<vmem>>, vector<1x128x128xbf16>
    %37 = vector.shape_cast %36 : vector<1x128x128xbf16> to vector<128x128xbf16>
    %cst_20 = arith.constant dense<0.000000e+00> : vector<16x128xf32>
    %38 = tpu.matmul %35, %37, %cst_20 {dimension_numbers = #tpu.dot_dimension_numbers<[1], [0], [0], [1], [0, 0, 1, 1], [], []>} : vector<16x128xbf16>, vector<128x128xbf16>, vector<16x128xf32> -> vector<16x128xf32>
    %c0_21 = arith.constant 0 : index
    %c0_22 = arith.constant 0 : index
    %c0_23 = arith.constant 0 : index
    %39 = vector.load %arg4[%c0_21, %c0_22, %c0_23] : memref<2x1x128xf32, #tpu.memory_space<vmem>>, vector<1x1x128xf32>
    %40 = vector.shape_cast %39 : vector<1x1x128xf32> to vector<1x128xf32>
    %41 = vector.broadcast %40 : vector<1x128xf32> to vector<16x128xf32>
    %42 = arith.addf %38, %41 : vector<16x128xf32>
    %43 = arith.addf %0, %42 : vector<16x128xf32>
    %c0_24 = arith.constant 0 : index
    %c0_25 = arith.constant 0 : index
    %c0_26 = arith.constant 0 : index
    %44 = vector.load %arg5[%c0_24, %c0_25, %c0_26] : memref<2x1x128xf32, #tpu.memory_space<vmem>>, vector<1x1x128xf32>
    %45 = vector.shape_cast %44 : vector<1x1x128xf32> to vector<1x128xf32>
    %c0_27 = arith.constant 0 : index
    %c0_28 = arith.constant 0 : index
    %c0_29 = arith.constant 0 : index
    %46 = vector.load %arg6[%c0_27, %c0_28, %c0_29] : memref<2x1x128xf32, #tpu.memory_space<vmem>>, vector<1x1x128xf32>
    %47 = vector.shape_cast %46 : vector<1x1x128xf32> to vector<1x128xf32>
    %cst_30 = arith.constant dense<0.000000e+00> : vector<16xf32>
    %48 = vector.multi_reduction <add>, %43, %cst_30 [1] : vector<16x128xf32> to vector<16xf32>
    %49 = vector.shape_cast %48 : vector<16xf32> to vector<16x1xf32>
    %cst_31 = arith.constant 1.280000e+02 : f32
    %50 = vector.broadcast %cst_31 : f32 to vector<16x1xf32>
    %51 = arith.divf %49, %50 : vector<16x1xf32>
    %52 = vector.broadcast %51 : vector<16x1xf32> to vector<16x128xf32>
    %53 = arith.subf %43, %52 : vector<16x128xf32>
    %54 = arith.mulf %53, %53 : vector<16x128xf32>
    %cst_32 = arith.constant dense<0.000000e+00> : vector<16xf32>
    %55 = vector.multi_reduction <add>, %54, %cst_32 [1] : vector<16x128xf32> to vector<16xf32>
    %56 = vector.shape_cast %55 : vector<16xf32> to vector<16x1xf32>
    %cst_33 = arith.constant 1.280000e+02 : f32
    %57 = vector.broadcast %cst_33 : f32 to vector<16x1xf32>
    %58 = arith.divf %56, %57 : vector<16x1xf32>
    %cst_34 = arith.constant 9.99999974E-6 : f32
    %59 = vector.broadcast %cst_34 : f32 to vector<16x1xf32>
    %60 = arith.addf %58, %59 : vector<16x1xf32>
    %61 = math.rsqrt %60 : vector<16x1xf32>
    %62 = vector.broadcast %61 : vector<16x1xf32> to vector<16x128xf32>
    %63 = arith.mulf %53, %62 : vector<16x128xf32>
    %64 = vector.broadcast %45 : vector<1x128xf32> to vector<16x128xf32>
    %65 = arith.mulf %63, %64 : vector<16x128xf32>
    %66 = vector.broadcast %47 : vector<1x128xf32> to vector<16x128xf32>
    %67 = arith.addf %65, %66 : vector<16x128xf32>
    %68 = arith.truncf %67 : vector<16x128xf32> to vector<16x128xbf16>
    %c0_35 = arith.constant 0 : index
    %c0_36 = arith.constant 0 : index
    %c0_37 = arith.constant 0 : index
    %69 = vector.load %arg9[%c0_35, %c0_36, %c0_37] : memref<2x128x256xbf16, #tpu.memory_space<vmem>>, vector<1x128x256xbf16>
    %70 = vector.shape_cast %69 : vector<1x128x256xbf16> to vector<128x256xbf16>
    %cst_38 = arith.constant dense<0.000000e+00> : vector<16x256xf32>
    %71 = tpu.matmul %68, %70, %cst_38 {dimension_numbers = #tpu.dot_dimension_numbers<[1], [0], [0], [1], [0, 0, 1, 1], [], []>} : vector<16x128xbf16>, vector<128x256xbf16>, vector<16x256xf32> -> vector<16x256xf32>
    %c0_39 = arith.constant 0 : index
    %c0_40 = arith.constant 0 : index
    %c0_41 = arith.constant 0 : index
    %72 = vector.load %arg10[%c0_39, %c0_40, %c0_41] : memref<2x1x256xf32, #tpu.memory_space<vmem>>, vector<1x1x256xf32>
    %73 = vector.shape_cast %72 : vector<1x1x256xf32> to vector<1x256xf32>
    %74 = vector.broadcast %73 : vector<1x256xf32> to vector<16x256xf32>
    %75 = arith.addf %71, %74 : vector<16x256xf32>
    %cst_42 = arith.constant 0.000000e+00 : f32
    %76 = vector.broadcast %cst_42 : f32 to vector<16x256xf32>
    %77 = arith.maximumf %75, %76 : vector<16x256xf32>
    %78 = arith.truncf %77 : vector<16x256xf32> to vector<16x256xbf16>
    %c0_43 = arith.constant 0 : index
    %c0_44 = arith.constant 0 : index
    %c0_45 = arith.constant 0 : index
    %79 = vector.load %arg11[%c0_43, %c0_44, %c0_45] : memref<2x256x128xbf16, #tpu.memory_space<vmem>>, vector<1x256x128xbf16>
    %80 = vector.shape_cast %79 : vector<1x256x128xbf16> to vector<256x128xbf16>
    %cst_46 = arith.constant dense<0.000000e+00> : vector<16x128xf32>
    %81 = tpu.matmul %78, %80, %cst_46 {dimension_numbers = #tpu.dot_dimension_numbers<[1], [0], [0], [1], [0, 0, 1, 1], [], []>} : vector<16x256xbf16>, vector<256x128xbf16>, vector<16x128xf32> -> vector<16x128xf32>
    %c0_47 = arith.constant 0 : index
    %c0_48 = arith.constant 0 : index
    %c0_49 = arith.constant 0 : index
    %82 = vector.load %arg12[%c0_47, %c0_48, %c0_49] : memref<2x1x128xf32, #tpu.memory_space<vmem>>, vector<1x1x128xf32>
    %83 = vector.shape_cast %82 : vector<1x1x128xf32> to vector<1x128xf32>
    %84 = vector.broadcast %83 : vector<1x128xf32> to vector<16x128xf32>
    %85 = arith.addf %81, %84 : vector<16x128xf32>
    %86 = arith.addf %67, %85 : vector<16x128xf32>
    %c0_50 = arith.constant 0 : index
    %c0_51 = arith.constant 0 : index
    %c0_52 = arith.constant 0 : index
    %87 = vector.load %arg7[%c0_50, %c0_51, %c0_52] : memref<2x1x128xf32, #tpu.memory_space<vmem>>, vector<1x1x128xf32>
    %88 = vector.shape_cast %87 : vector<1x1x128xf32> to vector<1x128xf32>
    %c0_53 = arith.constant 0 : index
    %c0_54 = arith.constant 0 : index
    %c0_55 = arith.constant 0 : index
    %89 = vector.load %arg8[%c0_53, %c0_54, %c0_55] : memref<2x1x128xf32, #tpu.memory_space<vmem>>, vector<1x1x128xf32>
    %90 = vector.shape_cast %89 : vector<1x1x128xf32> to vector<1x128xf32>
    %cst_56 = arith.constant dense<0.000000e+00> : vector<16xf32>
    %91 = vector.multi_reduction <add>, %86, %cst_56 [1] : vector<16x128xf32> to vector<16xf32>
    %92 = vector.shape_cast %91 : vector<16xf32> to vector<16x1xf32>
    %cst_57 = arith.constant 1.280000e+02 : f32
    %93 = vector.broadcast %cst_57 : f32 to vector<16x1xf32>
    %94 = arith.divf %92, %93 : vector<16x1xf32>
    %95 = vector.broadcast %94 : vector<16x1xf32> to vector<16x128xf32>
    %96 = arith.subf %86, %95 : vector<16x128xf32>
    %97 = arith.mulf %96, %96 : vector<16x128xf32>
    %cst_58 = arith.constant dense<0.000000e+00> : vector<16xf32>
    %98 = vector.multi_reduction <add>, %97, %cst_58 [1] : vector<16x128xf32> to vector<16xf32>
    %99 = vector.shape_cast %98 : vector<16xf32> to vector<16x1xf32>
    %cst_59 = arith.constant 1.280000e+02 : f32
    %100 = vector.broadcast %cst_59 : f32 to vector<16x1xf32>
    %101 = arith.divf %99, %100 : vector<16x1xf32>
    %cst_60 = arith.constant 9.99999974E-6 : f32
    %102 = vector.broadcast %cst_60 : f32 to vector<16x1xf32>
    %103 = arith.addf %101, %102 : vector<16x1xf32>
    %104 = math.rsqrt %103 : vector<16x1xf32>
    %105 = vector.broadcast %104 : vector<16x1xf32> to vector<16x128xf32>
    %106 = arith.mulf %96, %105 : vector<16x128xf32>
    %107 = vector.broadcast %88 : vector<1x128xf32> to vector<16x128xf32>
    %108 = arith.mulf %106, %107 : vector<16x128xf32>
    %109 = vector.broadcast %90 : vector<1x128xf32> to vector<16x128xf32>
    %110 = arith.addf %108, %109 : vector<16x128xf32>
    %111 = arith.truncf %110 : vector<16x128xf32> to vector<16x128xbf16>
    %c1 = arith.constant 1 : index
    %c0_61 = arith.constant 0 : index
    %c0_62 = arith.constant 0 : index
    %112 = vector.load %arg1[%c1, %c0_61, %c0_62] : memref<2x128x384xbf16, #tpu.memory_space<vmem>>, vector<1x128x384xbf16>
    %113 = vector.shape_cast %112 : vector<1x128x384xbf16> to vector<128x384xbf16>
    %cst_63 = arith.constant dense<0.000000e+00> : vector<16x384xf32>
    %114 = tpu.matmul %111, %113, %cst_63 {dimension_numbers = #tpu.dot_dimension_numbers<[1], [0], [0], [1], [0, 0, 1, 1], [], []>} : vector<16x128xbf16>, vector<128x384xbf16>, vector<16x384xf32> -> vector<16x384xf32>
    %c1_64 = arith.constant 1 : index
    %c0_65 = arith.constant 0 : index
    %c0_66 = arith.constant 0 : index
    %115 = vector.load %arg2[%c1_64, %c0_65, %c0_66] : memref<2x1x384xf32, #tpu.memory_space<vmem>>, vector<1x1x384xf32>
    %116 = vector.shape_cast %115 : vector<1x1x384xf32> to vector<1x384xf32>
    %117 = vector.broadcast %116 : vector<1x384xf32> to vector<16x384xf32>
    %118 = arith.addf %114, %117 : vector<16x384xf32>
    %119 = vector.extract_strided_slice %118 {offsets = [0, 0], sizes = [16, 128], strides = [1, 1]} : vector<16x384xf32> to vector<16x128xf32>
    %120 = vector.extract_strided_slice %118 {offsets = [0, 128], sizes = [16, 128], strides = [1, 1]} : vector<16x384xf32> to vector<16x128xf32>
    %121 = vector.extract_strided_slice %118 {offsets = [0, 256], sizes = [16, 128], strides = [1, 1]} : vector<16x384xf32> to vector<16x128xf32>
    %122 = tpu.concatenate %120, %120, %120, %120 in 0 : vector<16x128xf32>, vector<16x128xf32>, vector<16x128xf32>, vector<16x128xf32> -> vector<64x128xf32>
    %123 = arith.mulf %122, %1 : vector<64x128xf32>
    %124 = arith.truncf %123 : vector<64x128xf32> to vector<64x128xbf16>
    %125 = tpu.concatenate %121, %121, %121, %121 in 0 : vector<16x128xf32>, vector<16x128xf32>, vector<16x128xf32>, vector<16x128xf32> -> vector<64x128xf32>
    %126 = arith.mulf %125, %1 : vector<64x128xf32>
    %127 = arith.truncf %126 : vector<64x128xf32> to vector<64x128xbf16>
    %128 = arith.truncf %119 : vector<16x128xf32> to vector<16x128xbf16>
    %cst_67 = arith.constant dense<0.000000e+00> : vector<16x64xf32>
    %129 = tpu.matmul %128, %124, %cst_67 {dimension_numbers = #tpu.dot_dimension_numbers<[1], [1], [0], [0], [0, 0, 1, 0], [], []>} : vector<16x128xbf16>, vector<64x128xbf16>, vector<16x64xf32> -> vector<16x64xf32>
    %130 = arith.addf %129, %2 : vector<16x64xf32>
    %cst_68 = arith.constant dense<0xFF800000> : vector<16xf32>
    %131 = vector.multi_reduction <maximumf>, %130, %cst_68 [1] : vector<16x64xf32> to vector<16xf32>
    %132 = vector.shape_cast %131 : vector<16xf32> to vector<16x1xf32>
    %133 = vector.broadcast %132 : vector<16x1xf32> to vector<16x64xf32>
    %134 = arith.subf %130, %133 : vector<16x64xf32>
    %135 = math.exp %134 : vector<16x64xf32>
    %136 = arith.truncf %135 : vector<16x64xf32> to vector<16x64xbf16>
    %c0_69 = arith.constant 0 : index
    %c0_70 = arith.constant 0 : index
    %137 = vector.load %arg15[%c0_69, %c0_70] : memref<64x64xbf16, #tpu.memory_space<vmem>>, vector<64x64xbf16>
    %cst_71 = arith.constant dense<0.000000e+00> : vector<16x64xf32>
    %138 = tpu.matmul %136, %137, %cst_71 {dimension_numbers = #tpu.dot_dimension_numbers<[1], [0], [0], [1], [0, 0, 1, 1], [], []>} : vector<16x64xbf16>, vector<64x64xbf16>, vector<16x64xf32> -> vector<16x64xf32>
    %139 = tpu.reciprocal %138 {approx = true} : vector<16x64xf32> -> vector<16x64xf32>
    %140 = arith.mulf %135, %139 : vector<16x64xf32>
    %141 = arith.truncf %140 : vector<16x64xf32> to vector<16x64xbf16>
    %cst_72 = arith.constant dense<0.000000e+00> : vector<16x128xf32>
    %142 = tpu.matmul %141, %127, %cst_72 {dimension_numbers = #tpu.dot_dimension_numbers<[1], [0], [0], [1], [0, 0, 1, 1], [], []>} : vector<16x64xbf16>, vector<64x128xbf16>, vector<16x128xf32> -> vector<16x128xf32>
    %143 = arith.truncf %142 : vector<16x128xf32> to vector<16x128xbf16>
    %c1_73 = arith.constant 1 : index
    %c0_74 = arith.constant 0 : index
    %c0_75 = arith.constant 0 : index
    %144 = vector.load %arg3[%c1_73, %c0_74, %c0_75] : memref<2x128x128xbf16, #tpu.memory_space<vmem>>, vector<1x128x128xbf16>
    %145 = vector.shape_cast %144 : vector<1x128x128xbf16> to vector<128x128xbf16>
    %cst_76 = arith.constant dense<0.000000e+00> : vector<16x128xf32>
    %146 = tpu.matmul %143, %145, %cst_76 {dimension_numbers = #tpu.dot_dimension_numbers<[1], [0], [0], [1], [0, 0, 1, 1], [], []>} : vector<16x128xbf16>, vector<128x128xbf16>, vector<16x128xf32> -> vector<16x128xf32>
    %c1_77 = arith.constant 1 : index
    %c0_78 = arith.constant 0 : index
    %c0_79 = arith.constant 0 : index
    %147 = vector.load %arg4[%c1_77, %c0_78, %c0_79] : memref<2x1x128xf32, #tpu.memory_space<vmem>>, vector<1x1x128xf32>
    %148 = vector.shape_cast %147 : vector<1x1x128xf32> to vector<1x128xf32>
    %149 = vector.broadcast %148 : vector<1x128xf32> to vector<16x128xf32>
    %150 = arith.addf %146, %149 : vector<16x128xf32>
    %151 = arith.addf %110, %150 : vector<16x128xf32>
    %c1_80 = arith.constant 1 : index
    %c0_81 = arith.constant 0 : index
    %c0_82 = arith.constant 0 : index
    %152 = vector.load %arg5[%c1_80, %c0_81, %c0_82] : memref<2x1x128xf32, #tpu.memory_space<vmem>>, vector<1x1x128xf32>
    %153 = vector.shape_cast %152 : vector<1x1x128xf32> to vector<1x128xf32>
    %c1_83 = arith.constant 1 : index
    %c0_84 = arith.constant 0 : index
    %c0_85 = arith.constant 0 : index
    %154 = vector.load %arg6[%c1_83, %c0_84, %c0_85] : memref<2x1x128xf32, #tpu.memory_space<vmem>>, vector<1x1x128xf32>
    %155 = vector.shape_cast %154 : vector<1x1x128xf32> to vector<1x128xf32>
    %cst_86 = arith.constant dense<0.000000e+00> : vector<16xf32>
    %156 = vector.multi_reduction <add>, %151, %cst_86 [1] : vector<16x128xf32> to vector<16xf32>
    %157 = vector.shape_cast %156 : vector<16xf32> to vector<16x1xf32>
    %cst_87 = arith.constant 1.280000e+02 : f32
    %158 = vector.broadcast %cst_87 : f32 to vector<16x1xf32>
    %159 = arith.divf %157, %158 : vector<16x1xf32>
    %160 = vector.broadcast %159 : vector<16x1xf32> to vector<16x128xf32>
    %161 = arith.subf %151, %160 : vector<16x128xf32>
    %162 = arith.mulf %161, %161 : vector<16x128xf32>
    %cst_88 = arith.constant dense<0.000000e+00> : vector<16xf32>
    %163 = vector.multi_reduction <add>, %162, %cst_88 [1] : vector<16x128xf32> to vector<16xf32>
    %164 = vector.shape_cast %163 : vector<16xf32> to vector<16x1xf32>
    %cst_89 = arith.constant 1.280000e+02 : f32
    %165 = vector.broadcast %cst_89 : f32 to vector<16x1xf32>
    %166 = arith.divf %164, %165 : vector<16x1xf32>
    %cst_90 = arith.constant 9.99999974E-6 : f32
    %167 = vector.broadcast %cst_90 : f32 to vector<16x1xf32>
    %168 = arith.addf %166, %167 : vector<16x1xf32>
    %169 = math.rsqrt %168 : vector<16x1xf32>
    %170 = vector.broadcast %169 : vector<16x1xf32> to vector<16x128xf32>
    %171 = arith.mulf %161, %170 : vector<16x128xf32>
    %172 = vector.broadcast %153 : vector<1x128xf32> to vector<16x128xf32>
    %173 = arith.mulf %171, %172 : vector<16x128xf32>
    %174 = vector.broadcast %155 : vector<1x128xf32> to vector<16x128xf32>
    %175 = arith.addf %173, %174 : vector<16x128xf32>
    %176 = arith.truncf %175 : vector<16x128xf32> to vector<16x128xbf16>
    %c1_91 = arith.constant 1 : index
    %c0_92 = arith.constant 0 : index
    %c0_93 = arith.constant 0 : index
    %177 = vector.load %arg9[%c1_91, %c0_92, %c0_93] : memref<2x128x256xbf16, #tpu.memory_space<vmem>>, vector<1x128x256xbf16>
    %178 = vector.shape_cast %177 : vector<1x128x256xbf16> to vector<128x256xbf16>
    %cst_94 = arith.constant dense<0.000000e+00> : vector<16x256xf32>
    %179 = tpu.matmul %176, %178, %cst_94 {dimension_numbers = #tpu.dot_dimension_numbers<[1], [0], [0], [1], [0, 0, 1, 1], [], []>} : vector<16x128xbf16>, vector<128x256xbf16>, vector<16x256xf32> -> vector<16x256xf32>
    %c1_95 = arith.constant 1 : index
    %c0_96 = arith.constant 0 : index
    %c0_97 = arith.constant 0 : index
    %180 = vector.load %arg10[%c1_95, %c0_96, %c0_97] : memref<2x1x256xf32, #tpu.memory_space<vmem>>, vector<1x1x256xf32>
    %181 = vector.shape_cast %180 : vector<1x1x256xf32> to vector<1x256xf32>
    %182 = vector.broadcast %181 : vector<1x256xf32> to vector<16x256xf32>
    %183 = arith.addf %179, %182 : vector<16x256xf32>
    %cst_98 = arith.constant 0.000000e+00 : f32
    %184 = vector.broadcast %cst_98 : f32 to vector<16x256xf32>
    %185 = arith.maximumf %183, %184 : vector<16x256xf32>
    %186 = arith.truncf %185 : vector<16x256xf32> to vector<16x256xbf16>
    %c1_99 = arith.constant 1 : index
    %c0_100 = arith.constant 0 : index
    %c0_101 = arith.constant 0 : index
    %187 = vector.load %arg11[%c1_99, %c0_100, %c0_101] : memref<2x256x128xbf16, #tpu.memory_space<vmem>>, vector<1x256x128xbf16>
    %188 = vector.shape_cast %187 : vector<1x256x128xbf16> to vector<256x128xbf16>
    %cst_102 = arith.constant dense<0.000000e+00> : vector<16x128xf32>
    %189 = tpu.matmul %186, %188, %cst_102 {dimension_numbers = #tpu.dot_dimension_numbers<[1], [0], [0], [1], [0, 0, 1, 1], [], []>} : vector<16x256xbf16>, vector<256x128xbf16>, vector<16x128xf32> -> vector<16x128xf32>
    %c1_103 = arith.constant 1 : index
    %c0_104 = arith.constant 0 : index
    %c0_105 = arith.constant 0 : index
    %190 = vector.load %arg12[%c1_103, %c0_104, %c0_105] : memref<2x1x128xf32, #tpu.memory_space<vmem>>, vector<1x1x128xf32>
    %191 = vector.shape_cast %190 : vector<1x1x128xf32> to vector<1x128xf32>
    %192 = vector.broadcast %191 : vector<1x128xf32> to vector<16x128xf32>
    %193 = arith.addf %189, %192 : vector<16x128xf32>
    %194 = arith.addf %175, %193 : vector<16x128xf32>
    %c1_106 = arith.constant 1 : index
    %c0_107 = arith.constant 0 : index
    %c0_108 = arith.constant 0 : index
    %195 = vector.load %arg7[%c1_106, %c0_107, %c0_108] : memref<2x1x128xf32, #tpu.memory_space<vmem>>, vector<1x1x128xf32>
    %196 = vector.shape_cast %195 : vector<1x1x128xf32> to vector<1x128xf32>
    %c1_109 = arith.constant 1 : index
    %c0_110 = arith.constant 0 : index
    %c0_111 = arith.constant 0 : index
    %197 = vector.load %arg8[%c1_109, %c0_110, %c0_111] : memref<2x1x128xf32, #tpu.memory_space<vmem>>, vector<1x1x128xf32>
    %198 = vector.shape_cast %197 : vector<1x1x128xf32> to vector<1x128xf32>
    %cst_112 = arith.constant dense<0.000000e+00> : vector<16xf32>
    %199 = vector.multi_reduction <add>, %194, %cst_112 [1] : vector<16x128xf32> to vector<16xf32>
    %200 = vector.shape_cast %199 : vector<16xf32> to vector<16x1xf32>
    %cst_113 = arith.constant 1.280000e+02 : f32
    %201 = vector.broadcast %cst_113 : f32 to vector<16x1xf32>
    %202 = arith.divf %200, %201 : vector<16x1xf32>
    %203 = vector.broadcast %202 : vector<16x1xf32> to vector<16x128xf32>
    %204 = arith.subf %194, %203 : vector<16x128xf32>
    %205 = arith.mulf %204, %204 : vector<16x128xf32>
    %cst_114 = arith.constant dense<0.000000e+00> : vector<16xf32>
    %206 = vector.multi_reduction <add>, %205, %cst_114 [1] : vector<16x128xf32> to vector<16xf32>
    %207 = vector.shape_cast %206 : vector<16xf32> to vector<16x1xf32>
    %cst_115 = arith.constant 1.280000e+02 : f32
    %208 = vector.broadcast %cst_115 : f32 to vector<16x1xf32>
    %209 = arith.divf %207, %208 : vector<16x1xf32>
    %cst_116 = arith.constant 9.99999974E-6 : f32
    %210 = vector.broadcast %cst_116 : f32 to vector<16x1xf32>
    %211 = arith.addf %209, %210 : vector<16x1xf32>
    %212 = math.rsqrt %211 : vector<16x1xf32>
    %213 = vector.broadcast %212 : vector<16x1xf32> to vector<16x128xf32>
    %214 = arith.mulf %204, %213 : vector<16x128xf32>
    %215 = vector.broadcast %196 : vector<1x128xf32> to vector<16x128xf32>
    %216 = arith.mulf %214, %215 : vector<16x128xf32>
    %217 = vector.broadcast %198 : vector<1x128xf32> to vector<16x128xf32>
    %218 = arith.addf %216, %217 : vector<16x128xf32>
    %c0_117 = arith.constant 0 : index
    %c0_118 = arith.constant 0 : index
    %219 = vector.load %arg16[%c0_117, %c0_118] : memref<64x128xbf16, #tpu.memory_space<vmem>>, vector<64x128xbf16>
    %cst_119 = arith.constant dense<0.000000e+00> : vector<16x128xf32>
    %220 = tpu.matmul %141, %219, %cst_119 {dimension_numbers = #tpu.dot_dimension_numbers<[1], [0], [0], [1], [0, 0, 1, 1], [], []>} : vector<16x64xbf16>, vector<64x128xbf16>, vector<16x128xf32> -> vector<16x128xf32>
    %c0_120 = arith.constant 0 : index
    %c0_121 = arith.constant 0 : index
    %221 = vector.load %arg18[%c0_120, %c0_121] : memref<16x128xf32, #tpu.memory_space<vmem>>, vector<16x128xf32>
    tpu.vector_store %arg18[%c0_120, %c0_121], %220 {strides = array<i32>} : memref<16x128xf32, #tpu.memory_space<vmem>>, vector<16x128xf32>,
    %c0_122 = arith.constant 0 : index
    %c0_123 = arith.constant 0 : index
    %222 = vector.load %arg17[%c0_122, %c0_123] : memref<16x128xf32, #tpu.memory_space<vmem>>, vector<16x128xf32>
    tpu.vector_store %arg17[%c0_122, %c0_123], %218 {strides = array<i32>} : memref<16x128xf32, #tpu.memory_space<vmem>>, vector<16x128xf32>,
    return
  }
}

</mosaic_0001>

<llo_original>
// kernel: encoder.1
$region0: #{encoder.1}
  #allocation0 [shape = 'u32[]', space=smem, size = 0x4, offset = 0x4, fixed_abs, tag = 'smem constant byte address 0x4 - core index']
  #allocation1 [shape = 'u32[144,128]{1,0:T(1,128)}', space=vmem, size = 0x12000, scoped, tag = 'internal scratch']
  %s0 = inlined_call_operand.hbm [shape: f32[16,128], index: 0, kind: input, shape index: {}]
  %s1 = inlined_call_operand.hbm [shape: bf16[2,128,384], index: 1, kind: input, shape index: {}]
  %s2 = inlined_call_operand.hbm [shape: f32[2,1,384], index: 2, kind: input, shape index: {}]
  %s3 = inlined_call_operand.hbm [shape: bf16[2,128,128], index: 3, kind: input, shape index: {}]
  %s4 = inlined_call_operand.hbm [shape: f32[2,1,128], index: 4, kind: input, shape index: {}]
  %s5 = inlined_call_operand.hbm [shape: f32[2,1,128], index: 5, kind: input, shape index: {}]
  %s6 = inlined_call_operand.hbm [shape: f32[2,1,128], index: 6, kind: input, shape index: {}]
  %s7 = inlined_call_operand.hbm [shape: f32[2,1,128], index: 7, kind: input, shape index: {}]
  %s8 = inlined_call_operand.hbm [shape: f32[2,1,128], index: 8, kind: input, shape index: {}]
  %s9 = inlined_call_operand.hbm [shape: bf16[2,128,256], index: 9, kind: input, shape index: {}]
  %s10 = inlined_call_operand.hbm [shape: f32[2,1,256], index: 10, kind: input, shape index: {}]
  %s11 = inlined_call_operand.hbm [shape: bf16[2,256,128], index: 11, kind: input, shape index: {}]
  %s12 = inlined_call_operand.hbm [shape: f32[2,1,128], index: 12, kind: input, shape index: {}]
  %s13 = inlined_call_operand.hbm [shape: f32[64,128], index: 13, kind: input, shape index: {}]
  %s14 = inlined_call_operand.hbm [shape: f32[16,64], index: 14, kind: input, shape index: {}]
  %s15 = inlined_call_operand.vmem [shape: bf16[64,64], index: 15, kind: input, shape index: {}]
  %s16 = inlined_call_operand.vmem [shape: bf16[64,128], index: 16, kind: input, shape index: {}]
  %s17 = inlined_call_operand.hbm [shape: f32[16,128], index: 17, kind: output, shape index: {0}]
  %s18 = inlined_call_operand.vmem [shape: f32[16,128], index: 18, kind: output, shape index: {1}]
  %19 = xla_tuple %s17, %s18
  %s20 = sld [smem:[#allocation0]]
  $region146: #{encoder.1} parent=0
    _
  %s22 = ssub.s32 1, %s20
  %s23 = scalar_select 0, %s22, %s20
  $region1: #{encoder.1} parent=0
    #allocation2 [shape = 'u8[8192]{0}', space=vmem, size = 0x2000, scoped, tag = 'input window, operand 0, single buffered']
    #allocation3 [shape = 's32[1]{0}', space=sflag, size = 0x4, scoped, tag = 'scoped memory for encoder.1']
    #allocation4 [shape = 's32[1]{0}', space=sflag, size = 0x4, scoped, tag = 'scoped memory for encoder.1']
    #allocation5 [shape = 'u8[196608]{0}', space=vmem, size = 0x30000, scoped, tag = 'input window, operand 1, single buffered']
    #allocation6 [shape = 's32[1]{0}', space=sflag, size = 0x4, scoped, tag = 'scoped memory for encoder.1']
    #allocation7 [shape = 'u8[3072]{0}', space=vmem, size = 0xc00, scoped, tag = 'input window, operand 2, single buffered']
    #allocation8 [shape = 'u8[65536]{0}', space=vmem, size = 0x10000, scoped, tag = 'input window, operand 3, single buffered']
    #allocation9 [shape = 's32[1]{0}', space=sflag, size = 0x4, scoped, tag = 'scoped memory for encoder.1']
    #allocation10 [shape = 'u8[1024]{0}', space=vmem, size = 0x400, scoped, tag = 'input window, operand 4, single buffered']
    #allocation11 [shape = 'u8[1024]{0}', space=vmem, size = 0x400, scoped, tag = 'input window, operand 5, single buffered']
    #allocation12 [shape = 's32[1]{0}', space=sflag, size = 0x4, scoped, tag = 'scoped memory for encoder.1']
    #allocation13 [shape = 'u8[1024]{0}', space=vmem, size = 0x400, scoped, tag = 'input window, operand 6, single buffered']
    #allocation14 [shape = 'u8[1024]{0}', space=vmem, size = 0x400, scoped, tag = 'input window, operand 7, single buffered']
    #allocation15 [shape = 's32[1]{0}', space=sflag, size = 0x4, scoped, tag = 'scoped memory for encoder.1']
    #allocation16 [shape = 'u8[1024]{0}', space=vmem, size = 0x400, scoped, tag = 'input window, operand 8, single buffered']
    #allocation17 [shape = 'u8[131072]{0}', space=vmem, size = 0x20000, scoped, tag = 'input window, operand 9, single buffered']
    #allocation18 [shape = 's32[1]{0}', space=sflag, size = 0x4, scoped, tag = 'scoped memory for encoder.1']
    #allocation19 [shape = 'u8[2048]{0}', space=vmem, size = 0x800, scoped, tag = 'input window, operand 10, single buffered']
    #allocation20 [shape = 'u8[131072]{0}', space=vmem, size = 0x20000, scoped, tag = 'input window, operand 11, single buffered']
    #allocation21 [shape = 's32[1]{0}', space=sflag, size = 0x4, scoped, tag = 'scoped memory for encoder.1']
    #allocation22 [shape = 'u8[1024]{0}', space=vmem, size = 0x400, scoped, tag = 'input window, operand 12, single buffered']
    #allocation23 [shape = 'u8[32768]{0}', space=vmem, size = 0x8000, scoped, tag = 'input window, operand 13, single buffered']
    #allocation24 [shape = 's32[1]{0}', space=sflag, size = 0x4, scoped, tag = 'scoped memory for encoder.1']
    #allocation25 [shape = 'u8[8192]{0}', space=vmem, size = 0x2000, scoped, tag = 'input window, operand 14, single buffered']
    #allocation26 [shape = 'u8[8192]{0}', space=vmem, size = 0x2000, scoped, tag = 'output window, operand 0, single buffered']
    %24 = vsyncpa [#allocation3], 0
    %25 = vsyncpa [#allocation6], 0
    %26 = vsyncpa [#allocation9], 0
    %27 = vsyncpa [#allocation12], 0
    %28 = vsyncpa [#allocation15], 0
    %29 = vsyncpa [#allocation18], 0
    %30 = vsyncpa [#allocation21], 0
    %31 = vsyncpa [#allocation24], 0
    %32 = vsyncpa [#allocation4], 0
    // Predicated region
    $region2: #{encoder.1} parent=1 // pred_check
      _
    $region3: #{encoder.1} parent=1 // pred_check_branch
      %34 = sbr.rel (0) target = $region5
    $region4: #{encoder.1} parent=1 // pred_region
      %s36 = ssub.s32 256, 256
      %37 = vsyncadd [#allocation3], %s36
      %s38 = sshll.u32 [#allocation2], 4
      %s39 = int_to_ptr.vmem [resolvable:$true] %s38
      %44 = dma.hbm_to_vmem [thread:$0]  %s0, 256, %s39, [#allocation3], 128, 128, 8
    $region5: #{encoder.1} parent=1 // pred_fallthru
      _
    // Predicated region
    $region6: #{encoder.1} parent=1 // pred_check
      _
    $region7: #{encoder.1} parent=1 // pred_check_branch
      %46 = sbr.rel (0) target = $region9
    $region8: #{encoder.1} parent=1 // pred_region
      %s48 = ssub.s32 6144, 6144
      %49 = vsyncadd [#allocation6], %s48
      %s50 = sshll.u32 [#allocation5], 4
      %s51 = int_to_ptr.vmem [resolvable:$true] %s50
      %56 = dma.hbm_to_vmem [thread:$0]  %s1, 6144, %s51, [#allocation6], 192, 192, 12
    $region9: #{encoder.1} parent=1 // pred_fallthru
      _
    // Predicated region
    $region10: #{encoder.1} parent=1 // pred_check
      _
    $region11: #{encoder.1} parent=1 // pred_check_branch
      %58 = sbr.rel (0) target = $region13
    $region12: #{encoder.1} parent=1 // pred_region
      %s60 = ssub.s32 96, 96
      %61 = vsyncadd [#allocation6], %s60
      %s62 = sshll.u32 [#allocation7], 4
      %s63 = int_to_ptr.vmem [resolvable:$true] %s62
      %68 = dma.hbm_to_vmem [thread:$0]  %s2, 96, %s63, [#allocation6], 48, 48, 3
    $region13: #{encoder.1} parent=1 // pred_fallthru
      _
    // Predicated region
    $region14: #{encoder.1} parent=1 // pred_check
      _
    $region15: #{encoder.1} parent=1 // pred_check_branch
      %70 = sbr.rel (0) target = $region17
    $region16: #{encoder.1} parent=1 // pred_region
      %s72 = ssub.s32 2048, 2048
      %73 = vsyncadd [#allocation9], %s72
      %s74 = sshll.u32 [#allocation8], 4
      %s75 = int_to_ptr.vmem [resolvable:$true] %s74
      %80 = dma.hbm_to_vmem [thread:$0]  %s3, 2048, %s75, [#allocation9], 64, 64, 4
    $region17: #{encoder.1} parent=1 // pred_fallthru
      _
    // Predicated region
    $region18: #{encoder.1} parent=1 // pred_check
      _
    $region19: #{encoder.1} parent=1 // pred_check_branch
      %82 = sbr.rel (0) target = $region21
    $region20: #{encoder.1} parent=1 // pred_region
      %s84 = ssub.s32 32, 32
      %85 = vsyncadd [#allocation9], %s84
      %s86 = sshll.u32 [#allocation10], 4
      %s87 = int_to_ptr.vmem [resolvable:$true] %s86
      %92 = dma.hbm_to_vmem [thread:$0]  %s4, 32, %s87, [#allocation9], 16, 16, 1
    $region21: #{encoder.1} parent=1 // pred_fallthru
      _
    // Predicated region
    $region22: #{encoder.1} parent=1 // pred_check
      _
    $region23: #{encoder.1} parent=1 // pred_check_branch
      %94 = sbr.rel (0) target = $region25
    $region24: #{encoder.1} parent=1 // pred_region
      %s96 = ssub.s32 32, 32
      %97 = vsyncadd [#allocation12], %s96
      %s98 = sshll.u32 [#allocation11], 4
      %s99 = int_to_ptr.vmem [resolvable:$true] %s98
      %104 = dma.hbm_to_vmem [thread:$0]  %s5, 32, %s99, [#allocation12], 16, 16, 1
    $region25: #{encoder.1} parent=1 // pred_fallthru
      _
    // Predicated region
    $region26: #{encoder.1} parent=1 // pred_check
      _
    $region27: #{encoder.1} parent=1 // pred_check_branch
      %106 = sbr.rel (0) target = $region29
    $region28: #{encoder.1} parent=1 // pred_region
      %s108 = ssub.s32 32, 32
      %109 = vsyncadd [#allocation12], %s108
      %s110 = sshll.u32 [#allocation13], 4
      %s111 = int_to_ptr.vmem [resolvable:$true] %s110
      %116 = dma.hbm_to_vmem [thread:$0]  %s6, 32, %s111, [#allocation12], 16, 16, 1
    $region29: #{encoder.1} parent=1 // pred_fallthru
      _
    // Predicated region
    $region30: #{encoder.1} parent=1 // pred_check
      _
    $region31: #{encoder.1} parent=1 // pred_check_branch
      %118 = sbr.rel (0) target = $region33
    $region32: #{encoder.1} parent=1 // pred_region
      %s120 = ssub.s32 32, 32
      %121 = vsyncadd [#allocation15], %s120
      %s122 = sshll.u32 [#allocation14], 4
      %s123 = int_to_ptr.vmem [resolvable:$true] %s122
      %128 = dma.hbm_to_vmem [thread:$0]  %s7, 32, %s123, [#allocation15], 16, 16, 1
    $region33: #{encoder.1} parent=1 // pred_fallthru
      _
    // Predicated region
    $region34: #{encoder.1} parent=1 // pred_check
      _
    $region35: #{encoder.1} parent=1 // pred_check_branch
      %130 = sbr.rel (0) target = $region37
    $region36: #{encoder.1} parent=1 // pred_region
      %s132 = ssub.s32 32, 32
      %133 = vsyncadd [#allocation15], %s132
      %s134 = sshll.u32 [#allocation16], 4
      %s135 = int_to_ptr.vmem [resolvable:$true] %s134
      %140 = dma.hbm_to_vmem [thread:$0]  %s8, 32, %s135, [#allocation15], 16, 16, 1
    $region37: #{encoder.1} parent=1 // pred_fallthru
      _
    // Predicated region
    $region38: #{encoder.1} parent=1 // pred_check
      _
    $region39: #{encoder.1} parent=1 // pred_check_branch
      %142 = sbr.rel (0) target = $region41
    $region40: #{encoder.1} parent=1 // pred_region
      %s144 = ssub.s32 4096, 4096
      %145 = vsyncadd [#allocation18], %s144
      %s146 = sshll.u32 [#allocation17], 4
      %s147 = int_to_ptr.vmem [resolvable:$true] %s146
      %152 = dma.hbm_to_vmem [thread:$0]  %s9, 4096, %s147, [#allocation18], 128, 128, 8
    $region41: #{encoder.1} parent=1 // pred_fallthru
      _
    // Predicated region
    $region42: #{encoder.1} parent=1 // pred_check
      _
    $region43: #{encoder.1} parent=1 // pred_check_branch
      %154 = sbr.rel (0) target = $region45
    $region44: #{encoder.1} parent=1 // pred_region
      %s156 = ssub.s32 64, 64
      %157 = vsyncadd [#allocation18], %s156
      %s158 = sshll.u32 [#allocation19], 4
      %s159 = int_to_ptr.vmem [resolvable:$true] %s158
      %164 = dma.hbm_to_vmem [thread:$0]  %s10, 64, %s159, [#allocation18], 32, 32, 2
    $region45: #{encoder.1} parent=1 // pred_fallthru
      _
    // Predicated region
    $region46: #{encoder.1} parent=1 // pred_check
      _
    $region47: #{encoder.1} parent=1 // pred_check_branch
      %166 = sbr.rel (0) target = $region49
    $region48: #{encoder.1} parent=1 // pred_region
      %s168 = ssub.s32 4096, 4096
      %169 = vsyncadd [#allocation21], %s168
      %s170 = sshll.u32 [#allocation20], 4
      %s171 = int_to_ptr.vmem [resolvable:$true] %s170
      %176 = dma.hbm_to_vmem [thread:$0]  %s11, 4096, %s171, [#allocation21], 64, 64, 4
    $region49: #{encoder.1} parent=1 // pred_fallthru
      _
    // Predicated region
    $region50: #{encoder.1} parent=1 // pred_check
      _
    $region51: #{encoder.1} parent=1 // pred_check_branch
      %178 = sbr.rel (0) target = $region53
    $region52: #{encoder.1} parent=1 // pred_region
      %s180 = ssub.s32 32, 32
      %181 = vsyncadd [#allocation21], %s180
      %s182 = sshll.u32 [#allocation22], 4
      %s183 = int_to_ptr.vmem [resolvable:$true] %s182
      %188 = dma.hbm_to_vmem [thread:$0]  %s12, 32, %s183, [#allocation21], 16, 16, 1
    $region53: #{encoder.1} parent=1 // pred_fallthru
      _
    // Predicated region
    $region54: #{encoder.1} parent=1 // pred_check
      _
    $region55: #{encoder.1} parent=1 // pred_check_branch
      %190 = sbr.rel (0) target = $region57
    $region56: #{encoder.1} parent=1 // pred_region
      %s192 = ssub.s32 1024, 1024
      %193 = vsyncadd [#allocation24], %s192
      %s194 = sshll.u32 [#allocation23], 4
      %s195 = int_to_ptr.vmem [resolvable:$true] %s194
      %200 = dma.hbm_to_vmem [thread:$0]  %s13, 1024, %s195, [#allocation24], 128, 128, 8
    $region57: #{encoder.1} parent=1 // pred_fallthru
      _
    // Predicated region
    $region58: #{encoder.1} parent=1 // pred_check
      _
    $region59: #{encoder.1} parent=1 // pred_check_branch
      %202 = sbr.rel (0) target = $region61
    $region60: #{encoder.1} parent=1 // pred_region
      %s204 = ssub.s32 256, 256
      %205 = vsyncadd [#allocation24], %s204
      %s206 = sshll.u32 [#allocation25], 4
      %s207 = int_to_ptr.vmem [resolvable:$true] %s206
      %212 = dma.hbm_to_vmem [thread:$0]  %s14, 256, %s207, [#allocation24], 128, 128, 8
    $region61: #{encoder.1} parent=1 // pred_fallthru
      _
    // Predicated region
    $region62: #{encoder.1} parent=1 // pred_check
      _
    $region63: #{encoder.1} parent=1 // pred_check_branch
      %214 = sbr.rel (0) target = $region65
    $region64: #{encoder.1} parent=1 // pred_region
      _
    $region65: #{encoder.1} parent=1 // pred_fallthru
      _
    // Predicated region
    $region66: #{encoder.1} parent=1 // pred_check
      _
    $region67: #{encoder.1} parent=1 // pred_check_branch
      %216 = sbr.rel (0) target = $region69
    $region68: #{encoder.1} parent=1 // pred_region
      _
    $region69: #{encoder.1} parent=1 // pred_fallthru
      _
    // Predicated region
    $region70: #{encoder.1} parent=1 // pred_check
      _
    $region71: #{encoder.1} parent=1 // pred_check_branch
      %218 = sbr.rel (0) target = $region73
    $region72: #{encoder.1} parent=1 // pred_region
      %219 = dma.done [#allocation3], 256
    $region73: #{encoder.1} parent=1 // pred_fallthru
      _
    // Predicated region
    $region74: #{encoder.1} parent=1 // pred_check
      _
    $region75: #{encoder.1} parent=1 // pred_check_branch
      %221 = sbr.rel (0) target = $region77
    $region76: #{encoder.1} parent=1 // pred_region
      %222 = dma.done [#allocation6], 6144
    $region77: #{encoder.1} parent=1 // pred_fallthru
      _
    // Predicated region
    $region78: #{encoder.1} parent=1 // pred_check
      _
    $region79: #{encoder.1} parent=1 // pred_check_branch
      %224 = sbr.rel (0) target = $region81
    $region80: #{encoder.1} parent=1 // pred_region
      %225 = dma.done [#allocation6], 96
    $region81: #{encoder.1} parent=1 // pred_fallthru
      _
    // Predicated region
    $region82: #{encoder.1} parent=1 // pred_check
      _
    $region83: #{encoder.1} parent=1 // pred_check_branch
      %227 = sbr.rel (0) target = $region85
    $region84: #{encoder.1} parent=1 // pred_region
      %228 = dma.done [#allocation9], 2048
    $region85: #{encoder.1} parent=1 // pred_fallthru
      _
    // Predicated region
    $region86: #{encoder.1} parent=1 // pred_check
      _
    $region87: #{encoder.1} parent=1 // pred_check_branch
      %230 = sbr.rel (0) target = $region89
    $region88: #{encoder.1} parent=1 // pred_region
      %231 = dma.done [#allocation9], 32
    $region89: #{encoder.1} parent=1 // pred_fallthru
      _
    // Predicated region
    $region90: #{encoder.1} parent=1 // pred_check
      _
    $region91: #{encoder.1} parent=1 // pred_check_branch
      %233 = sbr.rel (0) target = $region93
    $region92: #{encoder.1} parent=1 // pred_region
      %234 = dma.done [#allocation12], 32
    $region93: #{encoder.1} parent=1 // pred_fallthru
      _
    // Predicated region
    $region94: #{encoder.1} parent=1 // pred_check
      _
    $region95: #{encoder.1} parent=1 // pred_check_branch
      %236 = sbr.rel (0) target = $region97
    $region96: #{encoder.1} parent=1 // pred_region
      %237 = dma.done [#allocation12], 32
    $region97: #{encoder.1} parent=1 // pred_fallthru
      _
    // Predicated region
    $region98: #{encoder.1} parent=1 // pred_check
      _
    $region99: #{encoder.1} parent=1 // pred_check_branch
      %239 = sbr.rel (0) target = $region101
    $region100: #{encoder.1} parent=1 // pred_region
      %240 = dma.done [#allocation15], 32
    $region101: #{encoder.1} parent=1 // pred_fallthru
      _
    // Predicated region
    $region102: #{encoder.1} parent=1 // pred_check
      _
    $region103: #{encoder.1} parent=1 // pred_check_branch
      %242 = sbr.rel (0) target = $region105
    $region104: #{encoder.1} parent=1 // pred_region
      %243 = dma.done [#allocation15], 32
    $region105: #{encoder.1} parent=1 // pred_fallthru
      _
    // Predicated region
    $region106: #{encoder.1} parent=1 // pred_check
      _
    $region107: #{encoder.1} parent=1 // pred_check_branch
      %245 = sbr.rel (0) target = $region109
    $region108: #{encoder.1} parent=1 // pred_region
      %246 = dma.done [#allocation18], 4096
    $region109: #{encoder.1} parent=1 // pred_fallthru
      _
    // Predicated region
    $region110: #{encoder.1} parent=1 // pred_check
      _
    $region111: #{encoder.1} parent=1 // pred_check_branch
      %248 = sbr.rel (0) target = $region113
    $region112: #{encoder.1} parent=1 // pred_region
      %249 = dma.done [#allocation18], 64
    $region113: #{encoder.1} parent=1 // pred_fallthru
      _
    // Predicated region
    $region114: #{encoder.1} parent=1 // pred_check
      _
    $region115: #{encoder.1} parent=1 // pred_check_branch
      %251 = sbr.rel (0) target = $region117
    $region116: #{encoder.1} parent=1 // pred_region
      %252 = dma.done [#allocation21], 4096
    $region117: #{encoder.1} parent=1 // pred_fallthru
      _
    // Predicated region
    $region118: #{encoder.1} parent=1 // pred_check
      _
    $region119: #{encoder.1} parent=1 // pred_check_branch
      %254 = sbr.rel (0) target = $region121
    $region120: #{encoder.1} parent=1 // pred_region
      %255 = dma.done [#allocation21], 32
    $region121: #{encoder.1} parent=1 // pred_fallthru
      _
    // Predicated region
    $region122: #{encoder.1} parent=1 // pred_check
      _
    $region123: #{encoder.1} parent=1 // pred_check_branch
      %257 = sbr.rel (0) target = $region125
    $region124: #{encoder.1} parent=1 // pred_region
      %258 = dma.done [#allocation24], 1024
    $region125: #{encoder.1} parent=1 // pred_fallthru
      _
    // Predicated region
    $region126: #{encoder.1} parent=1 // pred_check
      _
    $region127: #{encoder.1} parent=1 // pred_check_branch
      %260 = sbr.rel (0) target = $region129
    $region128: #{encoder.1} parent=1 // pred_region
      %261 = dma.done [#allocation24], 256
    $region129: #{encoder.1} parent=1 // pred_fallthru
      _
    %v263 = vld [vmem:[#allocation2] sm:$0xff]
    %v264 = vld [vmem:[#allocation2 + $0x8] sm:$0xff]
    %v265 = vld [vmem:[#allocation23] sm:$0xff]
    %v266 = vld [vmem:[#allocation23 + $0x8] sm:$0xff]
    %v267 = vld [vmem:[#allocation23 + $0x10] sm:$0xff]
    %v268 = vld [vmem:[#allocation23 + $0x18] sm:$0xff]
    %v269 = vld [vmem:[#allocation23 + $0x20] sm:$0xff]
    %v270 = vld [vmem:[#allocation23 + $0x28] sm:$0xff]
    %v271 = vld [vmem:[#allocation23 + $0x30] sm:$0xff]
    %v272 = vld [vmem:[#allocation23 + $0x38] sm:$0xff]
    %v273 = vld [vmem:[#allocation25] sm:$0xff]
    %v274 = vld [vmem:[#allocation25 + $0x8] sm:$0xff]
    %v275 = vpack.c.bf16 %v264, %v263
    %v276 = vld [vmem:[#allocation5] sm:$0xff]
    %v277 = vld [vmem:[#allocation5 + $0x8] sm:$0xf]
    %v278 = vld [vmem:[#allocation5 + $0xc] sm:$0xff]
    %v279 = vld [vmem:[#allocation5 + $0x14] sm:$0xf]
    %v280 = vld [vmem:[#allocation5 + $0x18] sm:$0xff]
    %v281 = vld [vmem:[#allocation5 + $0x20] sm:$0xf]
    %v282 = vld [vmem:[#allocation5 + $0x24] sm:$0xff]
    %v283 = vld [vmem:[#allocation5 + $0x2c] sm:$0xf]
    %v284 = vld [vmem:[#allocation5 + $0x30] sm:$0xff]
    %v285 = vld [vmem:[#allocation5 + $0x38] sm:$0xf]
    %v286 = vld [vmem:[#allocation5 + $0x3c] sm:$0xff]
    %v287 = vld [vmem:[#allocation5 + $0x44] sm:$0xf]
    %v288 = vld [vmem:[#allocation5 + $0x48] sm:$0xff]
    %v289 = vld [vmem:[#allocation5 + $0x50] sm:$0xf]
    %v290 = vld [vmem:[#allocation5 + $0x54] sm:$0xff]
    %v291 = vld [vmem:[#allocation5 + $0x5c] sm:$0xf]
    %v292 = vld [vmem:[#allocation5 + $0x60] sm:$0xff]
    %v293 = vld [vmem:[#allocation5 + $0x68] sm:$0xf]
    %v294 = vld [vmem:[#allocation5 + $0x6c] sm:$0xff]
    %v295 = vld [vmem:[#allocation5 + $0x74] sm:$0xf]
    %v296 = vld [vmem:[#allocation5 + $0x78] sm:$0xff]
    %v297 = vld [vmem:[#allocation5 + $0x80] sm:$0xf]
    %v298 = vld [vmem:[#allocation5 + $0x84] sm:$0xff]
    %v299 = vld [vmem:[#allocation5 + $0x8c] sm:$0xf]
    %v300 = vld [vmem:[#allocation5 + $0x90] sm:$0xff]
    %v301 = vld [vmem:[#allocation5 + $0x98] sm:$0xf]
    %v302 = vld [vmem:[#allocation5 + $0x9c] sm:$0xff]
    %v303 = vld [vmem:[#allocation5 + $0xa4] sm:$0xf]
    %v304 = vld [vmem:[#allocation5 + $0xa8] sm:$0xff]
    %v305 = vld [vmem:[#allocation5 + $0xb0] sm:$0xf]
    %v306 = vld [vmem:[#allocation5 + $0xb4] sm:$0xff]
    %v307 = vld [vmem:[#allocation5 + $0xbc] sm:$0xf]
    %v308 = vld [vmem:[#allocation7] sm:$0x7]
    %v310 = vlaneseq
    %v311 = vshrl.u32 %v310, 7
    %v312 = vsub.s32 0, %v311
    %v313 = vrot.slane %v308, %v312
    %v314 = vlaneseq
    %v315 = vshrl.u32 %v314, 7
    %v316 = vsub.s32 1, %v315
    %v317 = vrot.slane %v308, %v316
    %v318 = vlaneseq
    %v319 = vshrl.u32 %v318, 7
    %v320 = vsub.s32 2, %v319
    %v321 = vrot.slane %v308, %v320
    %v357 = vunpack.c.l.b16 %v276
    %v358 = vunpack.c.h.b16 %v276
    %v359 = vunpack.c.l.b16 %v277
    %v360 = vunpack.c.l.b16 %v278
    %v361 = vunpack.c.h.b16 %v278
    %v362 = vunpack.c.l.b16 %v279
    %v363 = vunpack.c.l.b16 %v280
    %v364 = vunpack.c.h.b16 %v280
    %v365 = vunpack.c.l.b16 %v281
    %v366 = vunpack.c.l.b16 %v282
    %v367 = vunpack.c.h.b16 %v282
    %v368 = vunpack.c.l.b16 %v283
    %v369 = vunpack.c.l.b16 %v284
    %v370 = vunpack.c.h.b16 %v284
    %v371 = vunpack.c.l.b16 %v285
    %v372 = vunpack.c.l.b16 %v286
    %v373 = vunpack.c.h.b16 %v286
    %v374 = vunpack.c.l.b16 %v287
    %v375 = vunpack.c.l.b16 %v288
    %v376 = vunpack.c.h.b16 %v288
    %v377 = vunpack.c.l.b16 %v289
    %v378 = vunpack.c.l.b16 %v290
    %v379 = vunpack.c.h.b16 %v290
    %v380 = vunpack.c.l.b16 %v291
    %v381 = vunpack.c.l.b16 %v292
    %v382 = vunpack.c.h.b16 %v292
    %v383 = vunpack.c.l.b16 %v293
    %v384 = vunpack.c.l.b16 %v294
    %v385 = vunpack.c.h.b16 %v294
    %v386 = vunpack.c.l.b16 %v295
    %v387 = vunpack.c.l.b16 %v296
    %v388 = vunpack.c.h.b16 %v296
    %v389 = vunpack.c.l.b16 %v297
    %v390 = vunpack.c.l.b16 %v298
    %v391 = vunpack.c.h.b16 %v298
    %v392 = vunpack.c.l.b16 %v299
    %v393 = vunpack.c.l.b16 %v300
    %v394 = vunpack.c.h.b16 %v300
    %v395 = vunpack.c.l.b16 %v301
    %v396 = vunpack.c.l.b16 %v302
    %v397 = vunpack.c.h.b16 %v302
    %v398 = vunpack.c.l.b16 %v303
    %v399 = vunpack.c.l.b16 %v304
    %v400 = vunpack.c.h.b16 %v304
    %v401 = vunpack.c.l.b16 %v305
    %v402 = vunpack.c.l.b16 %v306
    %v403 = vunpack.c.h.b16 %v306
    %v404 = vunpack.c.l.b16 %v307
    %v405 = vpack.c.b16 %v360, %v357
    %v406 = vpack.c.b16 %v361, %v358
    %v407 = vpack.c.b16 %v362, %v359
    %v408 = vpack.c.b16 %v366, %v363
    %v409 = vpack.c.b16 %v367, %v364
    %v410 = vpack.c.b16 %v368, %v365
    %v411 = vpack.c.b16 %v372, %v369
    %v412 = vpack.c.b16 %v373, %v370
    %v413 = vpack.c.b16 %v374, %v371
    %v414 = vpack.c.b16 %v378, %v375
    %v415 = vpack.c.b16 %v379, %v376
    %v416 = vpack.c.b16 %v380, %v377
    %v417 = vpack.c.b16 %v384, %v381
    %v418 = vpack.c.b16 %v385, %v382
    %v419 = vpack.c.b16 %v386, %v383
    %v420 = vpack.c.b16 %v390, %v387
    %v421 = vpack.c.b16 %v391, %v388
    %v422 = vpack.c.b16 %v392, %v389
    %v423 = vpack.c.b16 %v396, %v393
    %v424 = vpack.c.b16 %v397, %v394
    %v425 = vpack.c.b16 %v398, %v395
    %v426 = vpack.c.b16 %v402, %v399
    %v427 = vpack.c.b16 %v403, %v400
    %v428 = vpack.c.b16 %v404, %v401
    %453 = vmatprep.subr.bf16.mxu0 %v406
    %454 = vmatpush1.bf16.msra.mxu0 %v405
    %455 = vmatprep.subr.bf16.mxu0 %v409
    %456 = vmatpush1.bf16.msra.mxu0 %v408
    %457 = vmatprep.subr.bf16.mxu0 %v412
    %458 = vmatpush1.bf16.msra.mxu0 %v411
    %459 = vmatprep.subr.bf16.mxu0 %v415
    %460 = vmatpush1.bf16.msra.mxu0 %v414
    %461 = vmatprep.subr.bf16.mxu0 %v418
    %462 = vmatpush1.bf16.msra.mxu0 %v417
    %463 = vmatprep.subr.bf16.mxu0 %v421
    %464 = vmatpush1.bf16.msra.mxu0 %v420
    %465 = vmatprep.subr.bf16.mxu0 %v424
    %466 = vmatpush1.bf16.msra.mxu0 %v423
    %467 = vmatprep.subr.bf16.mxu0 %v427
    %468 = vmatpush1.bf16.msra.mxu0 %v426
    %469 = vmatprep.subr.bf16.mxu0 0
    %470 = vmatpush1.bf16.msra.mxu0 0
    %471 = vmatprep.subr.bf16.mxu0 0
    %472 = vmatpush1.bf16.msra.mxu0 0
    %473 = vmatprep.subr.bf16.mxu0 0
    %474 = vmatpush1.bf16.msra.mxu0 0
    %475 = vmatprep.subr.bf16.mxu0 0
    %476 = vmatpush1.bf16.msra.mxu0 0
    %477 = vmatprep.subr.bf16.mxu0 0
    %478 = vmatpush1.bf16.msra.mxu0 0
    %479 = vmatprep.subr.bf16.mxu0 0
    %480 = vmatpush1.bf16.msra.mxu0 0
    %481 = vmatprep.subr.bf16.mxu0 0
    %482 = vmatpush1.bf16.msra.mxu0 0
    %483 = vmatprep.subr.bf16.mxu0 0
    %484 = vmatpush1.bf16.msra.mxu0 0
    %485 = vmatprep.mubr.bf16.mxu0 0
    %486 = vmatmul.mubr.bf16.gmra.mrb[0].mxu0 %v275
    %v487 = vpop.f32.mrb[0].mxu0
    %v488 = vadd.f32 %v313, %v487
    %v489 = vpop.f32.mrb[0].mxu0
    %v490 = vadd.f32 %v317, %v489
    %v491 = vpop.f32.mrb[0].mxu0
    %v492 = vadd.f32 %v313, %v491
    %v493 = vpop.f32.mrb[0].mxu0
    %v494 = vadd.f32 %v317, %v493
    %495 = vdwg.mxu0
    %496 = vmatprep.subr.bf16.mxu0 0
    %497 = vmatpush1.bf16.msra.mxu0 %v407
    %498 = vmatprep.subr.bf16.mxu0 0
    %499 = vmatpush1.bf16.msra.mxu0 %v410
    %500 = vmatprep.subr.bf16.mxu0 0
    %501 = vmatpush1.bf16.msra.mxu0 %v413
    %502 = vmatprep.subr.bf16.mxu0 0
    %503 = vmatpush1.bf16.msra.mxu0 %v416
    %504 = vmatprep.subr.bf16.mxu0 0
    %505 = vmatpush1.bf16.msra.mxu0 %v419
    %506 = vmatprep.subr.bf16.mxu0 0
    %507 = vmatpush1.bf16.msra.mxu0 %v422
    %508 = vmatprep.subr.bf16.mxu0 0
    %509 = vmatpush1.bf16.msra.mxu0 %v425
    %510 = vmatprep.subr.bf16.mxu0 0
    %511 = vmatpush1.bf16.msra.mxu0 %v428
    %512 = vmatprep.subr.bf16.mxu0 0
    %513 = vmatpush1.bf16.msra.mxu0 0
    %514 = vmatprep.subr.bf16.mxu0 0
    %515 = vmatpush1.bf16.msra.mxu0 0
    %516 = vmatprep.subr.bf16.mxu0 0
    %517 = vmatpush1.bf16.msra.mxu0 0
    %518 = vmatprep.subr.bf16.mxu0 0
    %519 = vmatpush1.bf16.msra.mxu0 0
    %520 = vmatprep.subr.bf16.mxu0 0
    %521 = vmatpush1.bf16.msra.mxu0 0
    %522 = vmatprep.subr.bf16.mxu0 0
    %523 = vmatpush1.bf16.msra.mxu0 0
    %524 = vmatprep.subr.bf16.mxu0 0
    %525 = vmatpush1.bf16.msra.mxu0 0
    %526 = vmatprep.subr.bf16.mxu0 0
    %527 = vmatpush1.bf16.msra.mxu0 0
    %528 = vmatprep.mubr.bf16.mxu0 0
    %529 = vmatmul.mubr.bf16.gmra.mrb[0].mxu0 %v275
    %v530 = vpop.f32.mrb[0].mxu0
    %v531 = vadd.f32 %v321, %v530
    %v532 = vpop.f32.mrb[0].mxu0
    %v533 = vpop.f32.mrb[0].mxu0
    %v534 = vadd.f32 %v321, %v533
    %v535 = vpop.f32.mrb[0].mxu0
    %536 = vdwg.mxu0
    %v537 = vmul.f32 %v490, %v265
    %v538 = vmul.f32 %v494, %v266
    %v539 = vmul.f32 %v490, %v267
    %v540 = vmul.f32 %v494, %v268
    %v541 = vmul.f32 %v490, %v269
    %v542 = vmul.f32 %v494, %v270
    %v543 = vmul.f32 %v490, %v271
    %v544 = vmul.f32 %v494, %v272
    %v545 = vpack.c.bf16 %v538, %v537
    %v546 = vpack.c.bf16 %v540, %v539
    %v547 = vpack.c.bf16 %v542, %v541
    %v548 = vpack.c.bf16 %v544, %v543
    %v549 = vmul.f32 %v531, %v265
    %v550 = vmul.f32 %v534, %v266
    %v551 = vmul.f32 %v531, %v267
    %v552 = vmul.f32 %v534, %v268
    %v553 = vmul.f32 %v531, %v269
    %v554 = vmul.f32 %v534, %v270
    %v555 = vmul.f32 %v531, %v271
    %v556 = vmul.f32 %v534, %v272
    %v557 = vpack.c.bf16 %v550, %v549
    %v558 = vpack.c.bf16 %v552, %v551
    %v559 = vpack.c.bf16 %v554, %v553
    %v560 = vpack.c.bf16 %v556, %v555
    %v561 = vpack.c.bf16 %v492, %v488
    %562 = vmatprep.subr.bf16.mxu0 0
    %563 = vmatpush1.bf16.xpose.msra.mxu0 %v545
    %564 = vmatprep.subr.bf16.mxu0 0
    %565 = vmatpush1.bf16.xpose.msra.mxu0 %v546
    %566 = vmatprep.subr.bf16.mxu0 0
    %567 = vmatpush1.bf16.xpose.msra.mxu0 %v547
    %568 = vmatprep.subr.bf16.mxu0 0
    %569 = vmatpush1.bf16.xpose.msra.mxu0 %v548
    %570 = vmatprep.subr.bf16.mxu0 0
    %571 = vmatpush1.bf16.xpose.msra.mxu0 0
    %572 = vmatprep.subr.bf16.mxu0 0
    %573 = vmatpush1.bf16.xpose.msra.mxu0 0
    %574 = vmatprep.subr.bf16.mxu0 0
    %575 = vmatpush1.bf16.xpose.msra.mxu0 0
    %576 = vmatprep.subr.bf16.mxu0 0
    %577 = vmatpush1.bf16.xpose.msra.mxu0 0
    %578 = vmatprep.subr.bf16.mxu0 0
    %579 = vmatpush1.bf16.xpose.msra.mxu0 0
    %580 = vmatprep.subr.bf16.mxu0 0
    %581 = vmatpush1.bf16.xpose.msra.mxu0 0
    %582 = vmatprep.subr.bf16.mxu0 0
    %583 = vmatpush1.bf16.xpose.msra.mxu0 0
    %584 = vmatprep.subr.bf16.mxu0 0
    %585 = vmatpush1.bf16.xpose.msra.mxu0 0
    %586 = vmatprep.subr.bf16.mxu0 0
    %587 = vmatpush1.bf16.xpose.msra.mxu0 0
    %588 = vmatprep.subr.bf16.mxu0 0
    %589 = vmatpush1.bf16.xpose.msra.mxu0 0
    %590 = vmatprep.subr.bf16.mxu0 0
    %591 = vmatpush1.bf16.xpose.msra.mxu0 0
    %592 = vmatprep.subr.bf16.mxu0 0
    %593 = vmatpush1.bf16.xpose.msra.mxu0 0
    %594 = vmatprep.mubr.bf16.mxu0 0
    %595 = vmatmul.mubr.bf16.gmra.mrb[0].mxu0 %v561
    %v596 = vpop.f32.mrb[0].mxu0
    %v597 = vadd.f32 %v273, %v596
    %v598 = vpop.f32.mrb[0].mxu0
    %v599 = vpop.f32.mrb[0].mxu0
    %v600 = vadd.f32 %v274, %v599
    %v601 = vpop.f32.mrb[0].mxu0
    %602 = vdwg.mxu0
    %vm603 = vcmask 523264
    %v604 = vsel %vm603, %v597, -inf
    %605 = vmax.xlane.f32.xlu0 %v604
    %v606 = vpop.xlane.xlu0 %605
    %v607 = vsel %vm603, %v600, -inf
    %608 = vmax.xlane.f32.xlu0 %v607
    %v609 = vpop.xlane.xlu0 %608
    %v610 = vsub.f32 %v597, %v606
    %v611 = vsub.f32 %v600, %v609
    %v612 = vmul.f32 %v610, 1.442695
    %v613 = vpow.pop %v612
    %v614 = vmul.f32 %v611, 1.442695
    %v615 = vpow.pop %v614
    %v616 = vpack.c.bf16 %v615, %v613
    %v617 = vld [vmem:[%s15] sm:$0xf]
    %v618 = vld [vmem:[%s15 + $0x4] sm:$0xf]
    %v619 = vld [vmem:[%s15 + $0x8] sm:$0xf]
    %v620 = vld [vmem:[%s15 + $0xc] sm:$0xf]
    %v621 = vld [vmem:[%s15 + $0x10] sm:$0xf]
    %v622 = vld [vmem:[%s15 + $0x14] sm:$0xf]
    %v623 = vld [vmem:[%s15 + $0x18] sm:$0xf]
    %v624 = vld [vmem:[%s15 + $0x1c] sm:$0xf]
    %v633 = vunpack.c.l.b16 %v617
    %v634 = vunpack.c.l.b16 %v618
    %v635 = vunpack.c.l.b16 %v619
    %v636 = vunpack.c.l.b16 %v620
    %v637 = vunpack.c.l.b16 %v621
    %v638 = vunpack.c.l.b16 %v622
    %v639 = vunpack.c.l.b16 %v623
    %v640 = vunpack.c.l.b16 %v624
    %v641 = vpack.c.b16 %v634, %v633
    %v642 = vpack.c.b16 %v636, %v635
    %v643 = vpack.c.b16 %v638, %v637
    %v644 = vpack.c.b16 %v640, %v639
    %v650 = vsel %vm603, %v616, 0
    %652 = vmatprep.subr.bf16.mxu0 0
    %653 = vmatpush1.bf16.msra.mxu0 %v641
    %654 = vmatprep.subr.bf16.mxu0 0
    %655 = vmatpush1.bf16.msra.mxu0 %v642
    %656 = vmatprep.subr.bf16.mxu0 0
    %657 = vmatpush1.bf16.msra.mxu0 %v643
    %658 = vmatprep.subr.bf16.mxu0 0
    %659 = vmatpush1.bf16.msra.mxu0 %v644
    %660 = vmatprep.subr.bf16.mxu0 0
    %661 = vmatpush1.bf16.msra.mxu0 0
    %662 = vmatprep.subr.bf16.mxu0 0
    %663 = vmatpush1.bf16.msra.mxu0 0
    %664 = vmatprep.subr.bf16.mxu0 0
    %665 = vmatpush1.bf16.msra.mxu0 0
    %666 = vmatprep.subr.bf16.mxu0 0
    %667 = vmatpush1.bf16.msra.mxu0 0
    %668 = vmatprep.subr.bf16.mxu0 0
    %669 = vmatpush1.bf16.msra.mxu0 0
    %670 = vmatprep.subr.bf16.mxu0 0
    %671 = vmatpush1.bf16.msra.mxu0 0
    %672 = vmatprep.subr.bf16.mxu0 0
    %673 = vmatpush1.bf16.msra.mxu0 0
    %674 = vmatprep.subr.bf16.mxu0 0
    %675 = vmatpush1.bf16.msra.mxu0 0
    %676 = vmatprep.subr.bf16.mxu0 0
    %677 = vmatpush1.bf16.msra.mxu0 0
    %678 = vmatprep.subr.bf16.mxu0 0
    %679 = vmatpush1.bf16.msra.mxu0 0
    %680 = vmatprep.subr.bf16.mxu0 0
    %681 = vmatpush1.bf16.msra.mxu0 0
    %682 = vmatprep.subr.bf16.mxu0 0
    %683 = vmatpush1.bf16.msra.mxu0 0
    %684 = vmatprep.mubr.bf16.mxu0 0
    %685 = vmatmul.mubr.bf16.gmra.mrb[0].mxu0 %v650
    %v686 = vpop.f32.mrb[0].mxu0
    %v687 = vadd.f32 0.0, %v686
    %v688 = vpop.f32.mrb[0].mxu0
    %v689 = vpop.f32.mrb[0].mxu0
    %v690 = vadd.f32 0.0, %v689
    %v691 = vpop.f32.mrb[0].mxu0
    %692 = vdwg.mxu0
    %v693 = vrcp.pop %v687
    %v694 = vrcp.pop %v690
    %v695 = vmul.f32 %v613, %v693
    %v696 = vmul.f32 %v615, %v694
    %v697 = vpack.c.bf16 %v696, %v695
    %v699 = vsel %vm603, %v697, 0
    %701 = vmatprep.subr.bf16.mxu0 0
    %702 = vmatpush1.bf16.msra.mxu0 %v557
    %703 = vmatprep.subr.bf16.mxu0 0
    %704 = vmatpush1.bf16.msra.mxu0 %v558
    %705 = vmatprep.subr.bf16.mxu0 0
    %706 = vmatpush1.bf16.msra.mxu0 %v559
    %707 = vmatprep.subr.bf16.mxu0 0
    %708 = vmatpush1.bf16.msra.mxu0 %v560
    %709 = vmatprep.subr.bf16.mxu0 0
    %710 = vmatpush1.bf16.msra.mxu0 0
    %711 = vmatprep.subr.bf16.mxu0 0
    %712 = vmatpush1.bf16.msra.mxu0 0
    %713 = vmatprep.subr.bf16.mxu0 0
    %714 = vmatpush1.bf16.msra.mxu0 0
    %715 = vmatprep.subr.bf16.mxu0 0
    %716 = vmatpush1.bf16.msra.mxu0 0
    %717 = vmatprep.subr.bf16.mxu0 0
    %718 = vmatpush1.bf16.msra.mxu0 0
    %719 = vmatprep.subr.bf16.mxu0 0
    %720 = vmatpush1.bf16.msra.mxu0 0
    %721 = vmatprep.subr.bf16.mxu0 0
    %722 = vmatpush1.bf16.msra.mxu0 0
    %723 = vmatprep.subr.bf16.mxu0 0
    %724 = vmatpush1.bf16.msra.mxu0 0
    %725 = vmatprep.subr.bf16.mxu0 0
    %726 = vmatpush1.bf16.msra.mxu0 0
    %727 = vmatprep.subr.bf16.mxu0 0
    %728 = vmatpush1.bf16.msra.mxu0 0
    %729 = vmatprep.subr.bf16.mxu0 0
    %730 = vmatpush1.bf16.msra.mxu0 0
    %731 = vmatprep.subr.bf16.mxu0 0
    %732 = vmatpush1.bf16.msra.mxu0 0
    %733 = vmatprep.mubr.bf16.mxu0 0
    %734 = vmatmul.mubr.bf16.gmra.mrb[0].mxu0 %v699
    %v735 = vpop.f32.mrb[0].mxu0
    %v736 = vadd.f32 0.0, %v735
    %v737 = vpop.f32.mrb[0].mxu0
    %v738 = vpop.f32.mrb[0].mxu0
    %v739 = vadd.f32 0.0, %v738
    %v740 = vpop.f32.mrb[0].mxu0
    %741 = vdwg.mxu0
    %v742 = vpack.c.bf16 %v739, %v736
    %v743 = vld [vmem:[#allocation8] sm:$0xf]
    %v744 = vld [vmem:[#allocation8 + $0x4] sm:$0xf]
    %v745 = vld [vmem:[#allocation8 + $0x8] sm:$0xf]
    %v746 = vld [vmem:[#allocation8 + $0xc] sm:$0xf]
    %v747 = vld [vmem:[#allocation8 + $0x10] sm:$0xf]
    %v748 = vld [vmem:[#allocation8 + $0x14] sm:$0xf]
    %v749 = vld [vmem:[#allocation8 + $0x18] sm:$0xf]
    %v750 = vld [vmem:[#allocation8 + $0x1c] sm:$0xf]
    %v751 = vld [vmem:[#allocation8 + $0x20] sm:$0xf]
    %v752 = vld [vmem:[#allocation8 + $0x24] sm:$0xf]
    %v753 = vld [vmem:[#allocation8 + $0x28] sm:$0xf]
    %v754 = vld [vmem:[#allocation8 + $0x2c] sm:$0xf]
    %v755 = vld [vmem:[#allocation8 + $0x30] sm:$0xf]
    %v756 = vld [vmem:[#allocation8 + $0x34] sm:$0xf]
    %v757 = vld [vmem:[#allocation8 + $0x38] sm:$0xf]
    %v758 = vld [vmem:[#allocation8 + $0x3c] sm:$0xf]
    %v759 = vld [vmem:[#allocation10] sm:$0x1]
    %v761 = vlaneseq
    %v762 = vshrl.u32 %v761, 7
    %v763 = vsub.s32 0, %v762
    %v764 = vrot.slane %v759, %v763
    %v782 = vunpack.c.l.b16 %v743
    %v783 = vunpack.c.l.b16 %v744
    %v784 = vunpack.c.l.b16 %v745
    %v785 = vunpack.c.l.b16 %v746
    %v786 = vunpack.c.l.b16 %v747
    %v787 = vunpack.c.l.b16 %v748
    %v788 = vunpack.c.l.b16 %v749
    %v789 = vunpack.c.l.b16 %v750
    %v790 = vunpack.c.l.b16 %v751
    %v791 = vunpack.c.l.b16 %v752
    %v792 = vunpack.c.l.b16 %v753
    %v793 = vunpack.c.l.b16 %v754
    %v794 = vunpack.c.l.b16 %v755
    %v795 = vunpack.c.l.b16 %v756
    %v796 = vunpack.c.l.b16 %v757
    %v797 = vunpack.c.l.b16 %v758
    %v798 = vpack.c.b16 %v783, %v782
    %v799 = vpack.c.b16 %v785, %v784
    %v800 = vpack.c.b16 %v787, %v786
    %v801 = vpack.c.b16 %v789, %v788
    %v802 = vpack.c.b16 %v791, %v790
    %v803 = vpack.c.b16 %v793, %v792
    %v804 = vpack.c.b16 %v795, %v794
    %v805 = vpack.c.b16 %v797, %v796
    %814 = vmatprep.subr.bf16.mxu0 0
    %815 = vmatpush1.bf16.msra.mxu0 %v798
    %816 = vmatprep.subr.bf16.mxu0 0
    %817 = vmatpush1.bf16.msra.mxu0 %v799
    %818 = vmatprep.subr.bf16.mxu0 0
    %819 = vmatpush1.bf16.msra.mxu0 %v800
    %820 = vmatprep.subr.bf16.mxu0 0
    %821 = vmatpush1.bf16.msra.mxu0 %v801
    %822 = vmatprep.subr.bf16.mxu0 0
    %823 = vmatpush1.bf16.msra.mxu0 %v802
    %824 = vmatprep.subr.bf16.mxu0 0
    %825 = vmatpush1.bf16.msra.mxu0 %v803
    %826 = vmatprep.subr.bf16.mxu0 0
    %827 = vmatpush1.bf16.msra.mxu0 %v804
    %828 = vmatprep.subr.bf16.mxu0 0
    %829 = vmatpush1.bf16.msra.mxu0 %v805
    %830 = vmatprep.subr.bf16.mxu0 0
    %831 = vmatpush1.bf16.msra.mxu0 0
    %832 = vmatprep.subr.bf16.mxu0 0
    %833 = vmatpush1.bf16.msra.mxu0 0
    %834 = vmatprep.subr.bf16.mxu0 0
    %835 = vmatpush1.bf16.msra.mxu0 0
    %836 = vmatprep.subr.bf16.mxu0 0
    %837 = vmatpush1.bf16.msra.mxu0 0
    %838 = vmatprep.subr.bf16.mxu0 0
    %839 = vmatpush1.bf16.msra.mxu0 0
    %840 = vmatprep.subr.bf16.mxu0 0
    %841 = vmatpush1.bf16.msra.mxu0 0
    %842 = vmatprep.subr.bf16.mxu0 0
    %843 = vmatpush1.bf16.msra.mxu0 0
    %844 = vmatprep.subr.bf16.mxu0 0
    %845 = vmatpush1.bf16.msra.mxu0 0
    %846 = vmatprep.mubr.bf16.mxu0 0
    %847 = vmatmul.mubr.bf16.gmra.mrb[0].mxu0 %v742
    %v848 = vpop.f32.mrb[0].mxu0
    %v849 = vadd.f32 %v764, %v848
    %v850 = vpop.f32.mrb[0].mxu0
    %v851 = vpop.f32.mrb[0].mxu0
    %v852 = vadd.f32 %v764, %v851
    %v853 = vpop.f32.mrb[0].mxu0
    %854 = vdwg.mxu0
    %v855 = vadd.f32 %v263, %v849
    %v856 = vadd.f32 %v264, %v852
    %v857 = vld [vmem:[#allocation11] sm:$0x1]
    %v858 = vld [vmem:[#allocation13] sm:$0x1]
    %859 = vadd.xlane.f32.xlu0 %v855
    %v860 = vpop.xlane.xlu0 %859
    %861 = vadd.xlane.f32.xlu0 %v856
    %v862 = vpop.xlane.xlu0 %861
    %v863 = vrcp.pop 128.0
    %v864 = vmul.f32 %v860, %v863
    %v865 = vmul.f32 %v862, %v863
    %v866 = vsub.f32 %v855, %v864
    %v867 = vsub.f32 %v856, %v865
    %v868 = vmul.f32 %v866, %v866
    %v869 = vmul.f32 %v867, %v867
    %870 = vadd.xlane.f32.xlu0 %v868
    %v871 = vpop.xlane.xlu0 %870
    %872 = vadd.xlane.f32.xlu0 %v869
    %v873 = vpop.xlane.xlu0 %872
    %v874 = vmul.f32 %v871, %v863
    %v875 = vmul.f32 %v873, %v863
    %v876 = vadd.f32 %v874, 1e-05
    %v877 = vadd.f32 %v875, 1e-05
    %v878 = vrsqrt.pop %v876
    %v879 = vrsqrt.pop %v877
    %v880 = vmul.f32 %v866, %v878
    %v881 = vmul.f32 %v867, %v879
    %v883 = vlaneseq
    %v884 = vshrl.u32 %v883, 7
    %v885 = vsub.s32 0, %v884
    %v886 = vrot.slane %v857, %v885
    %v888 = vmul.f32 %v880, %v886
    %v889 = vmul.f32 %v881, %v886
    %v891 = vlaneseq
    %v892 = vshrl.u32 %v891, 7
    %v893 = vsub.s32 0, %v892
    %v894 = vrot.slane %v858, %v893
    %v896 = vadd.f32 %v888, %v894
    %v897 = vadd.f32 %v889, %v894
    %v898 = vpack.c.bf16 %v897, %v896
    %v899 = vld [vmem:[#allocation17] sm:$0xff]
    %v900 = vld [vmem:[#allocation17 + $0x8] sm:$0xff]
    %v901 = vld [vmem:[#allocation17 + $0x10] sm:$0xff]
    %v902 = vld [vmem:[#allocation17 + $0x18] sm:$0xff]
    %v903 = vld [vmem:[#allocation17 + $0x20] sm:$0xff]
    %v904 = vld [vmem:[#allocation17 + $0x28] sm:$0xff]
    %v905 = vld [vmem:[#allocation17 + $0x30] sm:$0xff]
    %v906 = vld [vmem:[#allocation17 + $0x38] sm:$0xff]
    %v907 = vld [vmem:[#allocation17 + $0x40] sm:$0xff]
    %v908 = vld [vmem:[#allocation17 + $0x48] sm:$0xff]
    %v909 = vld [vmem:[#allocation17 + $0x50] sm:$0xff]
    %v910 = vld [vmem:[#allocation17 + $0x58] sm:$0xff]
    %v911 = vld [vmem:[#allocation17 + $0x60] sm:$0xff]
    %v912 = vld [vmem:[#allocation17 + $0x68] sm:$0xff]
    %v913 = vld [vmem:[#allocation17 + $0x70] sm:$0xff]
    %v914 = vld [vmem:[#allocation17 + $0x78] sm:$0xff]
    %v915 = vld [vmem:[#allocation19] sm:$0x3]
    %v917 = vlaneseq
    %v918 = vshrl.u32 %v917, 7
    %v919 = vsub.s32 0, %v918
    %v920 = vrot.slane %v915, %v919
    %v921 = vlaneseq
    %v922 = vshrl.u32 %v921, 7
    %v923 = vsub.s32 1, %v922
    %v924 = vrot.slane %v915, %v923
    %v943 = vunpack.c.l.b16 %v899
    %v944 = vunpack.c.h.b16 %v899
    %v945 = vunpack.c.l.b16 %v900
    %v946 = vunpack.c.h.b16 %v900
    %v947 = vunpack.c.l.b16 %v901
    %v948 = vunpack.c.h.b16 %v901
    %v949 = vunpack.c.l.b16 %v902
    %v950 = vunpack.c.h.b16 %v902
    %v951 = vunpack.c.l.b16 %v903
    %v952 = vunpack.c.h.b16 %v903
    %v953 = vunpack.c.l.b16 %v904
    %v954 = vunpack.c.h.b16 %v904
    %v955 = vunpack.c.l.b16 %v905
    %v956 = vunpack.c.h.b16 %v905
    %v957 = vunpack.c.l.b16 %v906
    %v958 = vunpack.c.h.b16 %v906
    %v959 = vunpack.c.l.b16 %v907
    %v960 = vunpack.c.h.b16 %v907
    %v961 = vunpack.c.l.b16 %v908
    %v962 = vunpack.c.h.b16 %v908
    %v963 = vunpack.c.l.b16 %v909
    %v964 = vunpack.c.h.b16 %v909
    %v965 = vunpack.c.l.b16 %v910
    %v966 = vunpack.c.h.b16 %v910
    %v967 = vunpack.c.l.b16 %v911
    %v968 = vunpack.c.h.b16 %v911
    %v969 = vunpack.c.l.b16 %v912
    %v970 = vunpack.c.h.b16 %v912
    %v971 = vunpack.c.l.b16 %v913
    %v972 = vunpack.c.h.b16 %v913
    %v973 = vunpack.c.l.b16 %v914
    %v974 = vunpack.c.h.b16 %v914
    %v975 = vpack.c.b16 %v945, %v943
    %v976 = vpack.c.b16 %v946, %v944
    %v977 = vpack.c.b16 %v949, %v947
    %v978 = vpack.c.b16 %v950, %v948
    %v979 = vpack.c.b16 %v953, %v951
    %v980 = vpack.c.b16 %v954, %v952
    %v981 = vpack.c.b16 %v957, %v955
    %v982 = vpack.c.b16 %v958, %v956
    %v983 = vpack.c.b16 %v961, %v959
    %v984 = vpack.c.b16 %v962, %v960
    %v985 = vpack.c.b16 %v965, %v963
    %v986 = vpack.c.b16 %v966, %v964
    %v987 = vpack.c.b16 %v969, %v967
    %v988 = vpack.c.b16 %v970, %v968
    %v989 = vpack.c.b16 %v973, %v971
    %v990 = vpack.c.b16 %v974, %v972
    %1007 = vmatprep.subr.bf16.mxu0 %v976
    %1008 = vmatpush1.bf16.msra.mxu0 %v975
    %1009 = vmatprep.subr.bf16.mxu0 %v978
    %1010 = vmatpush1.bf16.msra.mxu0 %v977
    %1011 = vmatprep.subr.bf16.mxu0 %v980
    %1012 = vmatpush1.bf16.msra.mxu0 %v979
    %1013 = vmatprep.subr.bf16.mxu0 %v982
    %1014 = vmatpush1.bf16.msra.mxu0 %v981
    %1015 = vmatprep.subr.bf16.mxu0 %v984
    %1016 = vmatpush1.bf16.msra.mxu0 %v983
    %1017 = vmatprep.subr.bf16.mxu0 %v986
    %1018 = vmatpush1.bf16.msra.mxu0 %v985
    %1019 = vmatprep.subr.bf16.mxu0 %v988
    %1020 = vmatpush1.bf16.msra.mxu0 %v987
    %1021 = vmatprep.subr.bf16.mxu0 %v990
    %1022 = vmatpush1.bf16.msra.mxu0 %v989
    %1023 = vmatprep.subr.bf16.mxu0 0
    %1024 = vmatpush1.bf16.msra.mxu0 0
    %1025 = vmatprep.subr.bf16.mxu0 0
    %1026 = vmatpush1.bf16.msra.mxu0 0
    %1027 = vmatprep.subr.bf16.mxu0 0
    %1028 = vmatpush1.bf16.msra.mxu0 0
    %1029 = vmatprep.subr.bf16.mxu0 0
    %1030 = vmatpush1.bf16.msra.mxu0 0
    %1031 = vmatprep.subr.bf16.mxu0 0
    %1032 = vmatpush1.bf16.msra.mxu0 0
    %1033 = vmatprep.subr.bf16.mxu0 0
    %1034 = vmatpush1.bf16.msra.mxu0 0
    %1035 = vmatprep.subr.bf16.mxu0 0
    %1036 = vmatpush1.bf16.msra.mxu0 0
    %1037 = vmatprep.subr.bf16.mxu0 0
    %1038 = vmatpush1.bf16.msra.mxu0 0
    %1039 = vmatprep.mubr.bf16.mxu0 0
    %1040 = vmatmul.mubr.bf16.gmra.mrb[0].mxu0 %v898
    %v1041 = vpop.f32.mrb[0].mxu0
    %v1042 = vadd.f32 %v920, %v1041
    %v1043 = vpop.f32.mrb[0].mxu0
    %v1044 = vadd.f32 %v924, %v1043
    %v1045 = vpop.f32.mrb[0].mxu0
    %v1046 = vadd.f32 %v920, %v1045
    %v1047 = vpop.f32.mrb[0].mxu0
    %v1048 = vadd.f32 %v924, %v1047
    %1049 = vdwg.mxu0
    %v1050 = vmax.f32 %v1042, 0.0
    %v1051 = vmax.f32 %v1044, 0.0
    %v1052 = vmax.f32 %v1046, 0.0
    %v1053 = vmax.f32 %v1048, 0.0
    %v1054 = vpack.c.bf16 %v1052, %v1050
    %v1055 = vpack.c.bf16 %v1053, %v1051
    %v1056 = vld [vmem:[#allocation20] sm:$0xf]
    %v1057 = vld [vmem:[#allocation20 + $0x4] sm:$0xf]
    %v1058 = vld [vmem:[#allocation20 + $0x8] sm:$0xf]
    %v1059 = vld [vmem:[#allocation20 + $0xc] sm:$0xf]
    %v1060 = vld [vmem:[#allocation20 + $0x10] sm:$0xf]
    %v1061 = vld [vmem:[#allocation20 + $0x14] sm:$0xf]
    %v1062 = vld [vmem:[#allocation20 + $0x18] sm:$0xf]
    %v1063 = vld [vmem:[#allocation20 + $0x1c] sm:$0xf]
    %v1064 = vld [vmem:[#allocation20 + $0x20] sm:$0xf]
    %v1065 = vld [vmem:[#allocation20 + $0x24] sm:$0xf]
    %v1066 = vld [vmem:[#allocation20 + $0x28] sm:$0xf]
    %v1067 = vld [vmem:[#allocation20 + $0x2c] sm:$0xf]
    %v1068 = vld [vmem:[#allocation20 + $0x30] sm:$0xf]
    %v1069 = vld [vmem:[#allocation20 + $0x34] sm:$0xf]
    %v1070 = vld [vmem:[#allocation20 + $0x38] sm:$0xf]
    %v1071 = vld [vmem:[#allocation20 + $0x3c] sm:$0xf]
    %v1072 = vld [vmem:[#allocation20 + $0x40] sm:$0xf]
    %v1073 = vld [vmem:[#allocation20 + $0x44] sm:$0xf]
    %v1074 = vld [vmem:[#allocation20 + $0x48] sm:$0xf]
    %v1075 = vld [vmem:[#allocation20 + $0x4c] sm:$0xf]
    %v1076 = vld [vmem:[#allocation20 + $0x50] sm:$0xf]
    %v1077 = vld [vmem:[#allocation20 + $0x54] sm:$0xf]
    %v1078 = vld [vmem:[#allocation20 + $0x58] sm:$0xf]
    %v1079 = vld [vmem:[#allocation20 + $0x5c] sm:$0xf]
    %v1080 = vld [vmem:[#allocation20 + $0x60] sm:$0xf]
    %v1081 = vld [vmem:[#allocation20 + $0x64] sm:$0xf]
    %v1082 = vld [vmem:[#allocation20 + $0x68] sm:$0xf]
    %v1083 = vld [vmem:[#allocation20 + $0x6c] sm:$0xf]
    %v1084 = vld [vmem:[#allocation20 + $0x70] sm:$0xf]
    %v1085 = vld [vmem:[#allocation20 + $0x74] sm:$0xf]
    %v1086 = vld [vmem:[#allocation20 + $0x78] sm:$0xf]
    %v1087 = vld [vmem:[#allocation20 + $0x7c] sm:$0xf]
    %v1088 = vld [vmem:[#allocation22] sm:$0x1]
    %v1090 = vlaneseq
    %v1091 = vshrl.u32 %v1090, 7
    %v1092 = vsub.s32 0, %v1091
    %v1093 = vrot.slane %v1088, %v1092
    %v1127 = vunpack.c.l.b16 %v1056
    %v1128 = vunpack.c.l.b16 %v1057
    %v1129 = vunpack.c.l.b16 %v1058
    %v1130 = vunpack.c.l.b16 %v1059
    %v1131 = vunpack.c.l.b16 %v1060
    %v1132 = vunpack.c.l.b16 %v1061
    %v1133 = vunpack.c.l.b16 %v1062
    %v1134 = vunpack.c.l.b16 %v1063
    %v1135 = vunpack.c.l.b16 %v1064
    %v1136 = vunpack.c.l.b16 %v1065
    %v1137 = vunpack.c.l.b16 %v1066
    %v1138 = vunpack.c.l.b16 %v1067
    %v1139 = vunpack.c.l.b16 %v1068
    %v1140 = vunpack.c.l.b16 %v1069
    %v1141 = vunpack.c.l.b16 %v1070
    %v1142 = vunpack.c.l.b16 %v1071
    %v1143 = vunpack.c.l.b16 %v1072
    %v1144 = vunpack.c.l.b16 %v1073
    %v1145 = vunpack.c.l.b16 %v1074
    %v1146 = vunpack.c.l.b16 %v1075
    %v1147 = vunpack.c.l.b16 %v1076
    %v1148 = vunpack.c.l.b16 %v1077
    %v1149 = vunpack.c.l.b16 %v1078
    %v1150 = vunpack.c.l.b16 %v1079
    %v1151 = vunpack.c.l.b16 %v1080
    %v1152 = vunpack.c.l.b16 %v1081
    %v1153 = vunpack.c.l.b16 %v1082
    %v1154 = vunpack.c.l.b16 %v1083
    %v1155 = vunpack.c.l.b16 %v1084
    %v1156 = vunpack.c.l.b16 %v1085
    %v1157 = vunpack.c.l.b16 %v1086
    %v1158 = vunpack.c.l.b16 %v1087
    %v1159 = vpack.c.b16 %v1128, %v1127
    %v1160 = vpack.c.b16 %v1130, %v1129
    %v1161 = vpack.c.b16 %v1132, %v1131
    %v1162 = vpack.c.b16 %v1134, %v1133
    %v1163 = vpack.c.b16 %v1136, %v1135
    %v1164 = vpack.c.b16 %v1138, %v1137
    %v1165 = vpack.c.b16 %v1140, %v1139
    %v1166 = vpack.c.b16 %v1142, %v1141
    %v1167 = vpack.c.b16 %v1144, %v1143
    %v1168 = vpack.c.b16 %v1146, %v1145
    %v1169 = vpack.c.b16 %v1148, %v1147
    %v1170 = vpack.c.b16 %v1150, %v1149
    %v1171 = vpack.c.b16 %v1152, %v1151
    %v1172 = vpack.c.b16 %v1154, %v1153
    %v1173 = vpack.c.b16 %v1156, %v1155
    %v1174 = vpack.c.b16 %v1158, %v1157
    %1191 = vmatprep.subr.bf16.mxu0 0
    %1192 = vmatpush1.bf16.msra.mxu0 %v1159
    %1193 = vmatprep.subr.bf16.mxu0 0
    %1194 = vmatpush1.bf16.msra.mxu0 %v1160
    %1195 = vmatprep.subr.bf16.mxu0 0
    %1196 = vmatpush1.bf16.msra.mxu0 %v1161
    %1197 = vmatprep.subr.bf16.mxu0 0
    %1198 = vmatpush1.bf16.msra.mxu0 %v1162
    %1199 = vmatprep.subr.bf16.mxu0 0
    %1200 = vmatpush1.bf16.msra.mxu0 %v1163
    %1201 = vmatprep.subr.bf16.mxu0 0
    %1202 = vmatpush1.bf16.msra.mxu0 %v1164
    %1203 = vmatprep.subr.bf16.mxu0 0
    %1204 = vmatpush1.bf16.msra.mxu0 %v1165
    %1205 = vmatprep.subr.bf16.mxu0 0
    %1206 = vmatpush1.bf16.msra.mxu0 %v1166
    %1207 = vmatprep.subr.bf16.mxu0 0
    %1208 = vmatpush1.bf16.msra.mxu0 %v1167
    %1209 = vmatprep.subr.bf16.mxu0 0
    %1210 = vmatpush1.bf16.msra.mxu0 %v1168
    %1211 = vmatprep.subr.bf16.mxu0 0
    %1212 = vmatpush1.bf16.msra.mxu0 %v1169
    %1213 = vmatprep.subr.bf16.mxu0 0
    %1214 = vmatpush1.bf16.msra.mxu0 %v1170
    %1215 = vmatprep.subr.bf16.mxu0 0
    %1216 = vmatpush1.bf16.msra.mxu0 %v1171
    %1217 = vmatprep.subr.bf16.mxu0 0
    %1218 = vmatpush1.bf16.msra.mxu0 %v1172
    %1219 = vmatprep.subr.bf16.mxu0 0
    %1220 = vmatpush1.bf16.msra.mxu0 %v1173
    %1221 = vmatprep.subr.bf16.mxu0 0
    %1222 = vmatpush1.bf16.msra.mxu0 %v1174
    %1223 = vmatprep.mubr.bf16.mxu0 %v1055
    %1224 = vmatmul.mubr.bf16.gmra.mrb[0].mxu0 %v1054
    %v1225 = vpop.f32.mrb[0].mxu0
    %v1226 = vadd.f32 %v1093, %v1225
    %v1227 = vpop.f32.mrb[0].mxu0
    %v1228 = vpop.f32.mrb[0].mxu0
    %v1229 = vadd.f32 %v1093, %v1228
    %v1230 = vpop.f32.mrb[0].mxu0
    %1231 = vdwg.mxu0
    %v1232 = vadd.f32 %v896, %v1226
    %v1233 = vadd.f32 %v897, %v1229
    %v1234 = vld [vmem:[#allocation14] sm:$0x1]
    %v1235 = vld [vmem:[#allocation16] sm:$0x1]
    %1236 = vadd.xlane.f32.xlu0 %v1232
    %v1237 = vpop.xlane.xlu0 %1236
    %1238 = vadd.xlane.f32.xlu0 %v1233
    %v1239 = vpop.xlane.xlu0 %1238
    %v1240 = vmul.f32 %v1237, %v863
    %v1241 = vmul.f32 %v1239, %v863
    %v1242 = vsub.f32 %v1232, %v1240
    %v1243 = vsub.f32 %v1233, %v1241
    %v1244 = vmul.f32 %v1242, %v1242
    %v1245 = vmul.f32 %v1243, %v1243
    %1246 = vadd.xlane.f32.xlu0 %v1244
    %v1247 = vpop.xlane.xlu0 %1246
    %1248 = vadd.xlane.f32.xlu0 %v1245
    %v1249 = vpop.xlane.xlu0 %1248
    %v1250 = vmul.f32 %v1247, %v863
    %v1251 = vmul.f32 %v1249, %v863
    %v1252 = vadd.f32 %v1250, 1e-05
    %v1253 = vadd.f32 %v1251, 1e-05
    %v1254 = vrsqrt.pop %v1252
    %v1255 = vrsqrt.pop %v1253
    %v1256 = vmul.f32 %v1242, %v1254
    %v1257 = vmul.f32 %v1243, %v1255
    %v1259 = vlaneseq
    %v1260 = vshrl.u32 %v1259, 7
    %v1261 = vsub.s32 0, %v1260
    %v1262 = vrot.slane %v1234, %v1261
    %v1264 = vmul.f32 %v1256, %v1262
    %v1265 = vmul.f32 %v1257, %v1262
    %v1267 = vlaneseq
    %v1268 = vshrl.u32 %v1267, 7
    %v1269 = vsub.s32 0, %v1268
    %v1270 = vrot.slane %v1235, %v1269
    %v1272 = vadd.f32 %v1264, %v1270
    %v1273 = vadd.f32 %v1265, %v1270
    %v1274 = vpack.c.bf16 %v1273, %v1272
    %s1275 = scalar_lea.vmem [#allocation5], 192
    %v1276 = vld [vmem:[%s1275] sm:$0xff]
    %v1277 = vld [vmem:[%s1275 + $0x8] sm:$0xf]
    %v1278 = vld [vmem:[%s1275 + $0xc] sm:$0xff]
    %v1279 = vld [vmem:[%s1275 + $0x14] sm:$0xf]
    %v1280 = vld [vmem:[%s1275 + $0x18] sm:$0xff]
    %v1281 = vld [vmem:[%s1275 + $0x20] sm:$0xf]
    %v1282 = vld [vmem:[%s1275 + $0x24] sm:$0xff]
    %v1283 = vld [vmem:[%s1275 + $0x2c] sm:$0xf]
    %v1284 = vld [vmem:[%s1275 + $0x30] sm:$0xff]
    %v1285 = vld [vmem:[%s1275 + $0x38] sm:$0xf]
    %v1286 = vld [vmem:[%s1275 + $0x3c] sm:$0xff]
    %v1287 = vld [vmem:[%s1275 + $0x44] sm:$0xf]
    %v1288 = vld [vmem:[%s1275 + $0x48] sm:$0xff]
    %v1289 = vld [vmem:[%s1275 + $0x50] sm:$0xf]
    %v1290 = vld [vmem:[%s1275 + $0x54] sm:$0xff]
    %v1291 = vld [vmem:[%s1275 + $0x5c] sm:$0xf]
    %v1292 = vld [vmem:[%s1275 + $0x60] sm:$0xff]
    %v1293 = vld [vmem:[%s1275 + $0x68] sm:$0xf]
    %v1294 = vld [vmem:[%s1275 + $0x6c] sm:$0xff]
    %v1295 = vld [vmem:[%s1275 + $0x74] sm:$0xf]
    %v1296 = vld [vmem:[%s1275 + $0x78] sm:$0xff]
    %v1297 = vld [vmem:[%s1275 + $0x80] sm:$0xf]
    %v1298 = vld [vmem:[%s1275 + $0x84] sm:$0xff]
    %v1299 = vld [vmem:[%s1275 + $0x8c] sm:$0xf]
    %v1300 = vld [vmem:[%s1275 + $0x90] sm:$0xff]
    %v1301 = vld [vmem:[%s1275 + $0x98] sm:$0xf]
    %v1302 = vld [vmem:[%s1275 + $0x9c] sm:$0xff]
    %v1303 = vld [vmem:[%s1275 + $0xa4] sm:$0xf]
    %v1304 = vld [vmem:[%s1275 + $0xa8] sm:$0xff]
    %v1305 = vld [vmem:[%s1275 + $0xb0] sm:$0xf]
    %v1306 = vld [vmem:[%s1275 + $0xb4] sm:$0xff]
    %v1307 = vld [vmem:[%s1275 + $0xbc] sm:$0xf]
    %s1308 = scalar_lea.vmem [#allocation7], 3
    %v1309 = vld [vmem:[%s1308] sm:$0x7]
    %v1311 = vlaneseq
    %v1312 = vshrl.u32 %v1311, 7
    %v1313 = vsub.s32 0, %v1312
    %v1314 = vrot.slane %v1309, %v1313
    %v1315 = vlaneseq
    %v1316 = vshrl.u32 %v1315, 7
    %v1317 = vsub.s32 1, %v1316
    %v1318 = vrot.slane %v1309, %v1317
    %v1319 = vlaneseq
    %v1320 = vshrl.u32 %v1319, 7
    %v1321 = vsub.s32 2, %v1320
    %v1322 = vrot.slane %v1309, %v1321
    %v1358 = vunpack.c.l.b16 %v1276
    %v1359 = vunpack.c.h.b16 %v1276
    %v1360 = vunpack.c.l.b16 %v1277
    %v1361 = vunpack.c.l.b16 %v1278
    %v1362 = vunpack.c.h.b16 %v1278
    %v1363 = vunpack.c.l.b16 %v1279
    %v1364 = vunpack.c.l.b16 %v1280
    %v1365 = vunpack.c.h.b16 %v1280
    %v1366 = vunpack.c.l.b16 %v1281
    %v1367 = vunpack.c.l.b16 %v1282
    %v1368 = vunpack.c.h.b16 %v1282
    %v1369 = vunpack.c.l.b16 %v1283
    %v1370 = vunpack.c.l.b16 %v1284
    %v1371 = vunpack.c.h.b16 %v1284
    %v1372 = vunpack.c.l.b16 %v1285
    %v1373 = vunpack.c.l.b16 %v1286
    %v1374 = vunpack.c.h.b16 %v1286
    %v1375 = vunpack.c.l.b16 %v1287
    %v1376 = vunpack.c.l.b16 %v1288
    %v1377 = vunpack.c.h.b16 %v1288
    %v1378 = vunpack.c.l.b16 %v1289
    %v1379 = vunpack.c.l.b16 %v1290
    %v1380 = vunpack.c.h.b16 %v1290
    %v1381 = vunpack.c.l.b16 %v1291
    %v1382 = vunpack.c.l.b16 %v1292
    %v1383 = vunpack.c.h.b16 %v1292
    %v1384 = vunpack.c.l.b16 %v1293
    %v1385 = vunpack.c.l.b16 %v1294
    %v1386 = vunpack.c.h.b16 %v1294
    %v1387 = vunpack.c.l.b16 %v1295
    %v1388 = vunpack.c.l.b16 %v1296
    %v1389 = vunpack.c.h.b16 %v1296
    %v1390 = vunpack.c.l.b16 %v1297
    %v1391 = vunpack.c.l.b16 %v1298
    %v1392 = vunpack.c.h.b16 %v1298
    %v1393 = vunpack.c.l.b16 %v1299
    %v1394 = vunpack.c.l.b16 %v1300
    %v1395 = vunpack.c.h.b16 %v1300
    %v1396 = vunpack.c.l.b16 %v1301
    %v1397 = vunpack.c.l.b16 %v1302
    %v1398 = vunpack.c.h.b16 %v1302
    %v1399 = vunpack.c.l.b16 %v1303
    %v1400 = vunpack.c.l.b16 %v1304
    %v1401 = vunpack.c.h.b16 %v1304
    %v1402 = vunpack.c.l.b16 %v1305
    %v1403 = vunpack.c.l.b16 %v1306
    %v1404 = vunpack.c.h.b16 %v1306
    %v1405 = vunpack.c.l.b16 %v1307
    %v1406 = vpack.c.b16 %v1361, %v1358
    %v1407 = vpack.c.b16 %v1362, %v1359
    %v1408 = vpack.c.b16 %v1363, %v1360
    %v1409 = vpack.c.b16 %v1367, %v1364
    %v1410 = vpack.c.b16 %v1368, %v1365
    %v1411 = vpack.c.b16 %v1369, %v1366
    %v1412 = vpack.c.b16 %v1373, %v1370
    %v1413 = vpack.c.b16 %v1374, %v1371
    %v1414 = vpack.c.b16 %v1375, %v1372
    %v1415 = vpack.c.b16 %v1379, %v1376
    %v1416 = vpack.c.b16 %v1380, %v1377
    %v1417 = vpack.c.b16 %v1381, %v1378
    %v1418 = vpack.c.b16 %v1385, %v1382
    %v1419 = vpack.c.b16 %v1386, %v1383
    %v1420 = vpack.c.b16 %v1387, %v1384
    %v1421 = vpack.c.b16 %v1391, %v1388
    %v1422 = vpack.c.b16 %v1392, %v1389
    %v1423 = vpack.c.b16 %v1393, %v1390
    %v1424 = vpack.c.b16 %v1397, %v1394
    %v1425 = vpack.c.b16 %v1398, %v1395
    %v1426 = vpack.c.b16 %v1399, %v1396
    %v1427 = vpack.c.b16 %v1403, %v1400
    %v1428 = vpack.c.b16 %v1404, %v1401
    %v1429 = vpack.c.b16 %v1405, %v1402
    %1454 = vmatprep.subr.bf16.mxu0 %v1407
    %1455 = vmatpush1.bf16.msra.mxu0 %v1406
    %1456 = vmatprep.subr.bf16.mxu0 %v1410
    %1457 = vmatpush1.bf16.msra.mxu0 %v1409
    %1458 = vmatprep.subr.bf16.mxu0 %v1413
    %1459 = vmatpush1.bf16.msra.mxu0 %v1412
    %1460 = vmatprep.subr.bf16.mxu0 %v1416
    %1461 = vmatpush1.bf16.msra.mxu0 %v1415
    %1462 = vmatprep.subr.bf16.mxu0 %v1419
    %1463 = vmatpush1.bf16.msra.mxu0 %v1418
    %1464 = vmatprep.subr.bf16.mxu0 %v1422
    %1465 = vmatpush1.bf16.msra.mxu0 %v1421
    %1466 = vmatprep.subr.bf16.mxu0 %v1425
    %1467 = vmatpush1.bf16.msra.mxu0 %v1424
    %1468 = vmatprep.subr.bf16.mxu0 %v1428
    %1469 = vmatpush1.bf16.msra.mxu0 %v1427
    %1470 = vmatprep.subr.bf16.mxu0 0
    %1471 = vmatpush1.bf16.msra.mxu0 0
    %1472 = vmatprep.subr.bf16.mxu0 0
    %1473 = vmatpush1.bf16.msra.mxu0 0
    %1474 = vmatprep.subr.bf16.mxu0 0
    %1475 = vmatpush1.bf16.msra.mxu0 0
    %1476 = vmatprep.subr.bf16.mxu0 0
    %1477 = vmatpush1.bf16.msra.mxu0 0
    %1478 = vmatprep.subr.bf16.mxu0 0
    %1479 = vmatpush1.bf16.msra.mxu0 0
    %1480 = vmatprep.subr.bf16.mxu0 0
    %1481 = vmatpush1.bf16.msra.mxu0 0
    %1482 = vmatprep.subr.bf16.mxu0 0
    %1483 = vmatpush1.bf16.msra.mxu0 0
    %1484 = vmatprep.subr.bf16.mxu0 0
    %1485 = vmatpush1.bf16.msra.mxu0 0
    %1486 = vmatprep.mubr.bf16.mxu0 0
    %1487 = vmatmul.mubr.bf16.gmra.mrb[0].mxu0 %v1274
    %v1488 = vpop.f32.mrb[0].mxu0
    %v1489 = vadd.f32 %v1314, %v1488
    %v1490 = vpop.f32.mrb[0].mxu0
    %v1491 = vadd.f32 %v1318, %v1490
    %v1492 = vpop.f32.mrb[0].mxu0
    %v1493 = vadd.f32 %v1314, %v1492
    %v1494 = vpop.f32.mrb[0].mxu0
    %v1495 = vadd.f32 %v1318, %v1494
    %1496 = vdwg.mxu0
    %1497 = vmatprep.subr.bf16.mxu0 0
    %1498 = vmatpush1.bf16.msra.mxu0 %v1408
    %1499 = vmatprep.subr.bf16.mxu0 0
    %1500 = vmatpush1.bf16.msra.mxu0 %v1411
    %1501 = vmatprep.subr.bf16.mxu0 0
    %1502 = vmatpush1.bf16.msra.mxu0 %v1414
    %1503 = vmatprep.subr.bf16.mxu0 0
    %1504 = vmatpush1.bf16.msra.mxu0 %v1417
    %1505 = vmatprep.subr.bf16.mxu0 0
    %1506 = vmatpush1.bf16.msra.mxu0 %v1420
    %1507 = vmatprep.subr.bf16.mxu0 0
    %1508 = vmatpush1.bf16.msra.mxu0 %v1423
    %1509 = vmatprep.subr.bf16.mxu0 0
    %1510 = vmatpush1.bf16.msra.mxu0 %v1426
    %1511 = vmatprep.subr.bf16.mxu0 0
    %1512 = vmatpush1.bf16.msra.mxu0 %v1429
    %1513 = vmatprep.subr.bf16.mxu0 0
    %1514 = vmatpush1.bf16.msra.mxu0 0
    %1515 = vmatprep.subr.bf16.mxu0 0
    %1516 = vmatpush1.bf16.msra.mxu0 0
    %1517 = vmatprep.subr.bf16.mxu0 0
    %1518 = vmatpush1.bf16.msra.mxu0 0
    %1519 = vmatprep.subr.bf16.mxu0 0
    %1520 = vmatpush1.bf16.msra.mxu0 0
    %1521 = vmatprep.subr.bf16.mxu0 0
    %1522 = vmatpush1.bf16.msra.mxu0 0
    %1523 = vmatprep.subr.bf16.mxu0 0
    %1524 = vmatpush1.bf16.msra.mxu0 0
    %1525 = vmatprep.subr.bf16.mxu0 0
    %1526 = vmatpush1.bf16.msra.mxu0 0
    %1527 = vmatprep.subr.bf16.mxu0 0
    %1528 = vmatpush1.bf16.msra.mxu0 0
    %1529 = vmatprep.mubr.bf16.mxu0 0
    %1530 = vmatmul.mubr.bf16.gmra.mrb[0].mxu0 %v1274
    %v1531 = vpop.f32.mrb[0].mxu0
    %v1532 = vadd.f32 %v1322, %v1531
    %v1533 = vpop.f32.mrb[0].mxu0
    %v1534 = vpop.f32.mrb[0].mxu0
    %v1535 = vadd.f32 %v1322, %v1534
    %v1536 = vpop.f32.mrb[0].mxu0
    %1537 = vdwg.mxu0
    %v1538 = vmul.f32 %v1491, %v265
    %v1539 = vmul.f32 %v1495, %v266
    %v1540 = vmul.f32 %v1491, %v267
    %v1541 = vmul.f32 %v1495, %v268
    %v1542 = vmul.f32 %v1491, %v269
    %v1543 = vmul.f32 %v1495, %v270
    %v1544 = vmul.f32 %v1491, %v271
    %v1545 = vmul.f32 %v1495, %v272
    %v1546 = vpack.c.bf16 %v1539, %v1538
    %v1547 = vpack.c.bf16 %v1541, %v1540
    %v1548 = vpack.c.bf16 %v1543, %v1542
    %v1549 = vpack.c.bf16 %v1545, %v1544
    %v1550 = vmul.f32 %v1532, %v265
    %v1551 = vmul.f32 %v1535, %v266
    %v1552 = vmul.f32 %v1532, %v267
    %v1553 = vmul.f32 %v1535, %v268
    %v1554 = vmul.f32 %v1532, %v269
    %v1555 = vmul.f32 %v1535, %v270
    %v1556 = vmul.f32 %v1532, %v271
    %v1557 = vmul.f32 %v1535, %v272
    %v1558 = vpack.c.bf16 %v1551, %v1550
    %v1559 = vpack.c.bf16 %v1553, %v1552
    %v1560 = vpack.c.bf16 %v1555, %v1554
    %v1561 = vpack.c.bf16 %v1557, %v1556
    %v1562 = vpack.c.bf16 %v1493, %v1489
    %1563 = vmatprep.subr.bf16.mxu0 0
    %1564 = vmatpush1.bf16.xpose.msra.mxu0 %v1546
    %1565 = vmatprep.subr.bf16.mxu0 0
    %1566 = vmatpush1.bf16.xpose.msra.mxu0 %v1547
    %1567 = vmatprep.subr.bf16.mxu0 0
    %1568 = vmatpush1.bf16.xpose.msra.mxu0 %v1548
    %1569 = vmatprep.subr.bf16.mxu0 0
    %1570 = vmatpush1.bf16.xpose.msra.mxu0 %v1549
    %1571 = vmatprep.subr.bf16.mxu0 0
    %1572 = vmatpush1.bf16.xpose.msra.mxu0 0
    %1573 = vmatprep.subr.bf16.mxu0 0
    %1574 = vmatpush1.bf16.xpose.msra.mxu0 0
    %1575 = vmatprep.subr.bf16.mxu0 0
    %1576 = vmatpush1.bf16.xpose.msra.mxu0 0
    %1577 = vmatprep.subr.bf16.mxu0 0
    %1578 = vmatpush1.bf16.xpose.msra.mxu0 0
    %1579 = vmatprep.subr.bf16.mxu0 0
    %1580 = vmatpush1.bf16.xpose.msra.mxu0 0
    %1581 = vmatprep.subr.bf16.mxu0 0
    %1582 = vmatpush1.bf16.xpose.msra.mxu0 0
    %1583 = vmatprep.subr.bf16.mxu0 0
    %1584 = vmatpush1.bf16.xpose.msra.mxu0 0
    %1585 = vmatprep.subr.bf16.mxu0 0
    %1586 = vmatpush1.bf16.xpose.msra.mxu0 0
    %1587 = vmatprep.subr.bf16.mxu0 0
    %1588 = vmatpush1.bf16.xpose.msra.mxu0 0
    %1589 = vmatprep.subr.bf16.mxu0 0
    %1590 = vmatpush1.bf16.xpose.msra.mxu0 0
    %1591 = vmatprep.subr.bf16.mxu0 0
    %1592 = vmatpush1.bf16.xpose.msra.mxu0 0
    %1593 = vmatprep.subr.bf16.mxu0 0
    %1594 = vmatpush1.bf16.xpose.msra.mxu0 0
    %1595 = vmatprep.mubr.bf16.mxu0 0
    %1596 = vmatmul.mubr.bf16.gmra.mrb[0].mxu0 %v1562
    %v1597 = vpop.f32.mrb[0].mxu0
    %v1598 = vadd.f32 %v273, %v1597
    %v1599 = vpop.f32.mrb[0].mxu0
    %v1600 = vpop.f32.mrb[0].mxu0
    %v1601 = vadd.f32 %v274, %v1600
    %v1602 = vpop.f32.mrb[0].mxu0
    %1603 = vdwg.mxu0
    %v1604 = vsel %vm603, %v1598, -inf
    %1605 = vmax.xlane.f32.xlu0 %v1604
    %v1606 = vpop.xlane.xlu0 %1605
    %v1607 = vsel %vm603, %v1601, -inf
    %1608 = vmax.xlane.f32.xlu0 %v1607
    %v1609 = vpop.xlane.xlu0 %1608
    %v1610 = vsub.f32 %v1598, %v1606
    %v1611 = vsub.f32 %v1601, %v1609
    %v1612 = vmul.f32 %v1610, 1.442695
    %v1613 = vpow.pop %v1612
    %v1614 = vmul.f32 %v1611, 1.442695
    %v1615 = vpow.pop %v1614
    %v1616 = vpack.c.bf16 %v1615, %v1613
    %v1618 = vsel %vm603, %v1616, 0
    %1620 = vmatprep.subr.bf16.mxu0 0
    %1621 = vmatpush1.bf16.msra.mxu0 %v641
    %1622 = vmatprep.subr.bf16.mxu0 0
    %1623 = vmatpush1.bf16.msra.mxu0 %v642
    %1624 = vmatprep.subr.bf16.mxu0 0
    %1625 = vmatpush1.bf16.msra.mxu0 %v643
    %1626 = vmatprep.subr.bf16.mxu0 0
    %1627 = vmatpush1.bf16.msra.mxu0 %v644
    %1628 = vmatprep.subr.bf16.mxu0 0
    %1629 = vmatpush1.bf16.msra.mxu0 0
    %1630 = vmatprep.subr.bf16.mxu0 0
    %1631 = vmatpush1.bf16.msra.mxu0 0
    %1632 = vmatprep.subr.bf16.mxu0 0
    %1633 = vmatpush1.bf16.msra.mxu0 0
    %1634 = vmatprep.subr.bf16.mxu0 0
    %1635 = vmatpush1.bf16.msra.mxu0 0
    %1636 = vmatprep.subr.bf16.mxu0 0
    %1637 = vmatpush1.bf16.msra.mxu0 0
    %1638 = vmatprep.subr.bf16.mxu0 0
    %1639 = vmatpush1.bf16.msra.mxu0 0
    %1640 = vmatprep.subr.bf16.mxu0 0
    %1641 = vmatpush1.bf16.msra.mxu0 0
    %1642 = vmatprep.subr.bf16.mxu0 0
    %1643 = vmatpush1.bf16.msra.mxu0 0
    %1644 = vmatprep.subr.bf16.mxu0 0
    %1645 = vmatpush1.bf16.msra.mxu0 0
    %1646 = vmatprep.subr.bf16.mxu0 0
    %1647 = vmatpush1.bf16.msra.mxu0 0
    %1648 = vmatprep.subr.bf16.mxu0 0
    %1649 = vmatpush1.bf16.msra.mxu0 0
    %1650 = vmatprep.subr.bf16.mxu0 0
    %1651 = vmatpush1.bf16.msra.mxu0 0
    %1652 = vmatprep.mubr.bf16.mxu0 0
    %1653 = vmatmul.mubr.bf16.gmra.mrb[0].mxu0 %v1618
    %v1654 = vpop.f32.mrb[0].mxu0
    %v1655 = vadd.f32 0.0, %v1654
    %v1656 = vpop.f32.mrb[0].mxu0
    %v1657 = vpop.f32.mrb[0].mxu0
    %v1658 = vadd.f32 0.0, %v1657
    %v1659 = vpop.f32.mrb[0].mxu0
    %1660 = vdwg.mxu0
    %v1661 = vrcp.pop %v1655
    %v1662 = vrcp.pop %v1658
    %v1663 = vmul.f32 %v1613, %v1661
    %v1664 = vmul.f32 %v1615, %v1662
    %v1665 = vpack.c.bf16 %v1664, %v1663
    %v1667 = vsel %vm603, %v1665, 0
    %1669 = vmatprep.subr.bf16.mxu0 0
    %1670 = vmatpush1.bf16.msra.mxu0 %v1558
    %1671 = vmatprep.subr.bf16.mxu0 0
    %1672 = vmatpush1.bf16.msra.mxu0 %v1559
    %1673 = vmatprep.subr.bf16.mxu0 0
    %1674 = vmatpush1.bf16.msra.mxu0 %v1560
    %1675 = vmatprep.subr.bf16.mxu0 0
    %1676 = vmatpush1.bf16.msra.mxu0 %v1561
    %1677 = vmatprep.subr.bf16.mxu0 0
    %1678 = vmatpush1.bf16.msra.mxu0 0
    %1679 = vmatprep.subr.bf16.mxu0 0
    %1680 = vmatpush1.bf16.msra.mxu0 0
    %1681 = vmatprep.subr.bf16.mxu0 0
    %1682 = vmatpush1.bf16.msra.mxu0 0
    %1683 = vmatprep.subr.bf16.mxu0 0
    %1684 = vmatpush1.bf16.msra.mxu0 0
    %1685 = vmatprep.subr.bf16.mxu0 0
    %1686 = vmatpush1.bf16.msra.mxu0 0
    %1687 = vmatprep.subr.bf16.mxu0 0
    %1688 = vmatpush1.bf16.msra.mxu0 0
    %1689 = vmatprep.subr.bf16.mxu0 0
    %1690 = vmatpush1.bf16.msra.mxu0 0
    %1691 = vmatprep.subr.bf16.mxu0 0
    %1692 = vmatpush1.bf16.msra.mxu0 0
    %1693 = vmatprep.subr.bf16.mxu0 0
    %1694 = vmatpush1.bf16.msra.mxu0 0
    %1695 = vmatprep.subr.bf16.mxu0 0
    %1696 = vmatpush1.bf16.msra.mxu0 0
    %1697 = vmatprep.subr.bf16.mxu0 0
    %1698 = vmatpush1.bf16.msra.mxu0 0
    %1699 = vmatprep.subr.bf16.mxu0 0
    %1700 = vmatpush1.bf16.msra.mxu0 0
    %1701 = vmatprep.mubr.bf16.mxu0 0
    %1702 = vmatmul.mubr.bf16.gmra.mrb[0].mxu0 %v1667
    %v1703 = vpop.f32.mrb[0].mxu0
    %v1704 = vadd.f32 0.0, %v1703
    %v1705 = vpop.f32.mrb[0].mxu0
    %v1706 = vpop.f32.mrb[0].mxu0
    %v1707 = vadd.f32 0.0, %v1706
    %v1708 = vpop.f32.mrb[0].mxu0
    %1709 = vdwg.mxu0
    %v1710 = vpack.c.bf16 %v1707, %v1704
    %s1711 = scalar_lea.vmem [#allocation8], 64
    %v1712 = vld [vmem:[%s1711] sm:$0xf]
    %v1713 = vld [vmem:[%s1711 + $0x4] sm:$0xf]
    %v1714 = vld [vmem:[%s1711 + $0x8] sm:$0xf]
    %v1715 = vld [vmem:[%s1711 + $0xc] sm:$0xf]
    %v1716 = vld [vmem:[%s1711 + $0x10] sm:$0xf]
    %v1717 = vld [vmem:[%s1711 + $0x14] sm:$0xf]
    %v1718 = vld [vmem:[%s1711 + $0x18] sm:$0xf]
    %v1719 = vld [vmem:[%s1711 + $0x1c] sm:$0xf]
    %v1720 = vld [vmem:[%s1711 + $0x20] sm:$0xf]
    %v1721 = vld [vmem:[%s1711 + $0x24] sm:$0xf]
    %v1722 = vld [vmem:[%s1711 + $0x28] sm:$0xf]
    %v1723 = vld [vmem:[%s1711 + $0x2c] sm:$0xf]
    %v1724 = vld [vmem:[%s1711 + $0x30] sm:$0xf]
    %v1725 = vld [vmem:[%s1711 + $0x34] sm:$0xf]
    %v1726 = vld [vmem:[%s1711 + $0x38] sm:$0xf]
    %v1727 = vld [vmem:[%s1711 + $0x3c] sm:$0xf]
    %s1728 = scalar_lea.vmem [#allocation10], 1
    %v1729 = vld [vmem:[%s1728] sm:$0x1]
    %v1731 = vlaneseq
    %v1732 = vshrl.u32 %v1731, 7
    %v1733 = vsub.s32 0, %v1732
    %v1734 = vrot.slane %v1729, %v1733
    %v1752 = vunpack.c.l.b16 %v1712
    %v1753 = vunpack.c.l.b16 %v1713
    %v1754 = vunpack.c.l.b16 %v1714
    %v1755 = vunpack.c.l.b16 %v1715
    %v1756 = vunpack.c.l.b16 %v1716
    %v1757 = vunpack.c.l.b16 %v1717
    %v1758 = vunpack.c.l.b16 %v1718
    %v1759 = vunpack.c.l.b16 %v1719
    %v1760 = vunpack.c.l.b16 %v1720
    %v1761 = vunpack.c.l.b16 %v1721
    %v1762 = vunpack.c.l.b16 %v1722
    %v1763 = vunpack.c.l.b16 %v1723
    %v1764 = vunpack.c.l.b16 %v1724
    %v1765 = vunpack.c.l.b16 %v1725
    %v1766 = vunpack.c.l.b16 %v1726
    %v1767 = vunpack.c.l.b16 %v1727
    %v1768 = vpack.c.b16 %v1753, %v1752
    %v1769 = vpack.c.b16 %v1755, %v1754
    %v1770 = vpack.c.b16 %v1757, %v1756
    %v1771 = vpack.c.b16 %v1759, %v1758
    %v1772 = vpack.c.b16 %v1761, %v1760
    %v1773 = vpack.c.b16 %v1763, %v1762
    %v1774 = vpack.c.b16 %v1765, %v1764
    %v1775 = vpack.c.b16 %v1767, %v1766
    %1784 = vmatprep.subr.bf16.mxu0 0
    %1785 = vmatpush1.bf16.msra.mxu0 %v1768
    %1786 = vmatprep.subr.bf16.mxu0 0
    %1787 = vmatpush1.bf16.msra.mxu0 %v1769
    %1788 = vmatprep.subr.bf16.mxu0 0
    %1789 = vmatpush1.bf16.msra.mxu0 %v1770
    %1790 = vmatprep.subr.bf16.mxu0 0
    %1791 = vmatpush1.bf16.msra.mxu0 %v1771
    %1792 = vmatprep.subr.bf16.mxu0 0
    %1793 = vmatpush1.bf16.msra.mxu0 %v1772
    %1794 = vmatprep.subr.bf16.mxu0 0
    %1795 = vmatpush1.bf16.msra.mxu0 %v1773
    %1796 = vmatprep.subr.bf16.mxu0 0
    %1797 = vmatpush1.bf16.msra.mxu0 %v1774
    %1798 = vmatprep.subr.bf16.mxu0 0
    %1799 = vmatpush1.bf16.msra.mxu0 %v1775
    %1800 = vmatprep.subr.bf16.mxu0 0
    %1801 = vmatpush1.bf16.msra.mxu0 0
    %1802 = vmatprep.subr.bf16.mxu0 0
    %1803 = vmatpush1.bf16.msra.mxu0 0
    %1804 = vmatprep.subr.bf16.mxu0 0
    %1805 = vmatpush1.bf16.msra.mxu0 0
    %1806 = vmatprep.subr.bf16.mxu0 0
    %1807 = vmatpush1.bf16.msra.mxu0 0
    %1808 = vmatprep.subr.bf16.mxu0 0
    %1809 = vmatpush1.bf16.msra.mxu0 0
    %1810 = vmatprep.subr.bf16.mxu0 0
    %1811 = vmatpush1.bf16.msra.mxu0 0
    %1812 = vmatprep.subr.bf16.mxu0 0
    %1813 = vmatpush1.bf16.msra.mxu0 0
    %1814 = vmatprep.subr.bf16.mxu0 0
    %1815 = vmatpush1.bf16.msra.mxu0 0
    %1816 = vmatprep.mubr.bf16.mxu0 0
    %1817 = vmatmul.mubr.bf16.gmra.mrb[0].mxu0 %v1710
    %v1818 = vpop.f32.mrb[0].mxu0
    %v1819 = vadd.f32 %v1734, %v1818
    %v1820 = vpop.f32.mrb[0].mxu0
    %v1821 = vpop.f32.mrb[0].mxu0
    %v1822 = vadd.f32 %v1734, %v1821
    %v1823 = vpop.f32.mrb[0].mxu0
    %1824 = vdwg.mxu0
    %v1825 = vadd.f32 %v1272, %v1819
    %v1826 = vadd.f32 %v1273, %v1822
    %s1827 = scalar_lea.vmem [#allocation11], 1
    %v1828 = vld [vmem:[%s1827] sm:$0x1]
    %s1829 = scalar_lea.vmem [#allocation13], 1
    %v1830 = vld [vmem:[%s1829] sm:$0x1]
    %1831 = vadd.xlane.f32.xlu0 %v1825
    %v1832 = vpop.xlane.xlu0 %1831
    %1833 = vadd.xlane.f32.xlu0 %v1826
    %v1834 = vpop.xlane.xlu0 %1833
    %v1835 = vmul.f32 %v1832, %v863
    %v1836 = vmul.f32 %v1834, %v863
    %v1837 = vsub.f32 %v1825, %v1835
    %v1838 = vsub.f32 %v1826, %v1836
    %v1839 = vmul.f32 %v1837, %v1837
    %v1840 = vmul.f32 %v1838, %v1838
    %1841 = vadd.xlane.f32.xlu0 %v1839
    %v1842 = vpop.xlane.xlu0 %1841
    %1843 = vadd.xlane.f32.xlu0 %v1840
    %v1844 = vpop.xlane.xlu0 %1843
    %v1845 = vmul.f32 %v1842, %v863
    %v1846 = vmul.f32 %v1844, %v863
    %v1847 = vadd.f32 %v1845, 1e-05
    %v1848 = vadd.f32 %v1846, 1e-05
    %v1849 = vrsqrt.pop %v1847
    %v1850 = vrsqrt.pop %v1848
    %v1851 = vmul.f32 %v1837, %v1849
    %v1852 = vmul.f32 %v1838, %v1850
    %v1854 = vlaneseq
    %v1855 = vshrl.u32 %v1854, 7
    %v1856 = vsub.s32 0, %v1855
    %v1857 = vrot.slane %v1828, %v1856
    %v1859 = vmul.f32 %v1851, %v1857
    %v1860 = vmul.f32 %v1852, %v1857
    %v1862 = vlaneseq
    %v1863 = vshrl.u32 %v1862, 7
    %v1864 = vsub.s32 0, %v1863
    %v1865 = vrot.slane %v1830, %v1864
    %v1867 = vadd.f32 %v1859, %v1865
    %v1868 = vadd.f32 %v1860, %v1865
    %v1869 = vpack.c.bf16 %v1868, %v1867
    %s1870 = scalar_lea.vmem [#allocation17], 128
    %v1871 = vld [vmem:[%s1870] sm:$0xff]
    %v1872 = vld [vmem:[%s1870 + $0x8] sm:$0xff]
    %v1873 = vld [vmem:[%s1870 + $0x10] sm:$0xff]
    %v1874 = vld [vmem:[%s1870 + $0x18] sm:$0xff]
    %v1875 = vld [vmem:[%s1870 + $0x20] sm:$0xff]
    %v1876 = vld [vmem:[%s1870 + $0x28] sm:$0xff]
    %v1877 = vld [vmem:[%s1870 + $0x30] sm:$0xff]
    %v1878 = vld [vmem:[%s1870 + $0x38] sm:$0xff]
    %v1879 = vld [vmem:[%s1870 + $0x40] sm:$0xff]
    %v1880 = vld [vmem:[%s1870 + $0x48] sm:$0xff]
    %v1881 = vld [vmem:[%s1870 + $0x50] sm:$0xff]
    %v1882 = vld [vmem:[%s1870 + $0x58] sm:$0xff]
    %v1883 = vld [vmem:[%s1870 + $0x60] sm:$0xff]
    %v1884 = vld [vmem:[%s1870 + $0x68] sm:$0xff]
    %v1885 = vld [vmem:[%s1870 + $0x70] sm:$0xff]
    %v1886 = vld [vmem:[%s1870 + $0x78] sm:$0xff]
    %s1887 = scalar_lea.vmem [#allocation19], 2
    %v1888 = vld [vmem:[%s1887] sm:$0x3]
    %v1890 = vlaneseq
    %v1891 = vshrl.u32 %v1890, 7
    %v1892 = vsub.s32 0, %v1891
    %v1893 = vrot.slane %v1888, %v1892
    %v1894 = vlaneseq
    %v1895 = vshrl.u32 %v1894, 7
    %v1896 = vsub.s32 1, %v1895
    %v1897 = vrot.slane %v1888, %v1896
    %v1916 = vunpack.c.l.b16 %v1871
    %v1917 = vunpack.c.h.b16 %v1871
    %v1918 = vunpack.c.l.b16 %v1872
    %v1919 = vunpack.c.h.b16 %v1872
    %v1920 = vunpack.c.l.b16 %v1873
    %v1921 = vunpack.c.h.b16 %v1873
    %v1922 = vunpack.c.l.b16 %v1874
    %v1923 = vunpack.c.h.b16 %v1874
    %v1924 = vunpack.c.l.b16 %v1875
    %v1925 = vunpack.c.h.b16 %v1875
    %v1926 = vunpack.c.l.b16 %v1876
    %v1927 = vunpack.c.h.b16 %v1876
    %v1928 = vunpack.c.l.b16 %v1877
    %v1929 = vunpack.c.h.b16 %v1877
    %v1930 = vunpack.c.l.b16 %v1878
    %v1931 = vunpack.c.h.b16 %v1878
    %v1932 = vunpack.c.l.b16 %v1879
    %v1933 = vunpack.c.h.b16 %v1879
    %v1934 = vunpack.c.l.b16 %v1880
    %v1935 = vunpack.c.h.b16 %v1880
    %v1936 = vunpack.c.l.b16 %v1881
    %v1937 = vunpack.c.h.b16 %v1881
    %v1938 = vunpack.c.l.b16 %v1882
    %v1939 = vunpack.c.h.b16 %v1882
    %v1940 = vunpack.c.l.b16 %v1883
    %v1941 = vunpack.c.h.b16 %v1883
    %v1942 = vunpack.c.l.b16 %v1884
    %v1943 = vunpack.c.h.b16 %v1884
    %v1944 = vunpack.c.l.b16 %v1885
    %v1945 = vunpack.c.h.b16 %v1885
    %v1946 = vunpack.c.l.b16 %v1886
    %v1947 = vunpack.c.h.b16 %v1886
    %v1948 = vpack.c.b16 %v1918, %v1916
    %v1949 = vpack.c.b16 %v1919, %v1917
    %v1950 = vpack.c.b16 %v1922, %v1920
    %v1951 = vpack.c.b16 %v1923, %v1921
    %v1952 = vpack.c.b16 %v1926, %v1924
    %v1953 = vpack.c.b16 %v1927, %v1925
    %v1954 = vpack.c.b16 %v1930, %v1928
    %v1955 = vpack.c.b16 %v1931, %v1929
    %v1956 = vpack.c.b16 %v1934, %v1932
    %v1957 = vpack.c.b16 %v1935, %v1933
    %v1958 = vpack.c.b16 %v1938, %v1936
    %v1959 = vpack.c.b16 %v1939, %v1937
    %v1960 = vpack.c.b16 %v1942, %v1940
    %v1961 = vpack.c.b16 %v1943, %v1941
    %v1962 = vpack.c.b16 %v1946, %v1944
    %v1963 = vpack.c.b16 %v1947, %v1945
    %1980 = vmatprep.subr.bf16.mxu0 %v1949
    %1981 = vmatpush1.bf16.msra.mxu0 %v1948
    %1982 = vmatprep.subr.bf16.mxu0 %v1951
    %1983 = vmatpush1.bf16.msra.mxu0 %v1950
    %1984 = vmatprep.subr.bf16.mxu0 %v1953
    %1985 = vmatpush1.bf16.msra.mxu0 %v1952
    %1986 = vmatprep.subr.bf16.mxu0 %v1955
    %1987 = vmatpush1.bf16.msra.mxu0 %v1954
    %1988 = vmatprep.subr.bf16.mxu0 %v1957
    %1989 = vmatpush1.bf16.msra.mxu0 %v1956
    %1990 = vmatprep.subr.bf16.mxu0 %v1959
    %1991 = vmatpush1.bf16.msra.mxu0 %v1958
    %1992 = vmatprep.subr.bf16.mxu0 %v1961
    %1993 = vmatpush1.bf16.msra.mxu0 %v1960
    %1994 = vmatprep.subr.bf16.mxu0 %v1963
    %1995 = vmatpush1.bf16.msra.mxu0 %v1962
    %1996 = vmatprep.subr.bf16.mxu0 0
    %1997 = vmatpush1.bf16.msra.mxu0 0
    %1998 = vmatprep.subr.bf16.mxu0 0
    %1999 = vmatpush1.bf16.msra.mxu0 0
    %2000 = vmatprep.subr.bf16.mxu0 0
    %2001 = vmatpush1.bf16.msra.mxu0 0
    %2002 = vmatprep.subr.bf16.mxu0 0
    %2003 = vmatpush1.bf16.msra.mxu0 0
    %2004 = vmatprep.subr.bf16.mxu0 0
    %2005 = vmatpush1.bf16.msra.mxu0 0
    %2006 = vmatprep.subr.bf16.mxu0 0
    %2007 = vmatpush1.bf16.msra.mxu0 0
    %2008 = vmatprep.subr.bf16.mxu0 0
    %2009 = vmatpush1.bf16.msra.mxu0 0
    %2010 = vmatprep.subr.bf16.mxu0 0
    %2011 = vmatpush1.bf16.msra.mxu0 0
    %2012 = vmatprep.mubr.bf16.mxu0 0
    %2013 = vmatmul.mubr.bf16.gmra.mrb[0].mxu0 %v1869
    %v2014 = vpop.f32.mrb[0].mxu0
    %v2015 = vadd.f32 %v1893, %v2014
    %v2016 = vpop.f32.mrb[0].mxu0
    %v2017 = vadd.f32 %v1897, %v2016
    %v2018 = vpop.f32.mrb[0].mxu0
    %v2019 = vadd.f32 %v1893, %v2018
    %v2020 = vpop.f32.mrb[0].mxu0
    %v2021 = vadd.f32 %v1897, %v2020
    %2022 = vdwg.mxu0
    %v2023 = vmax.f32 %v2015, 0.0
    %v2024 = vmax.f32 %v2017, 0.0
    %v2025 = vmax.f32 %v2019, 0.0
    %v2026 = vmax.f32 %v2021, 0.0
    %v2027 = vpack.c.bf16 %v2025, %v2023
    %v2028 = vpack.c.bf16 %v2026, %v2024
    %s2029 = scalar_lea.vmem [#allocation20], 128
    %v2030 = vld [vmem:[%s2029] sm:$0xf]
    %v2031 = vld [vmem:[%s2029 + $0x4] sm:$0xf]
    %v2032 = vld [vmem:[%s2029 + $0x8] sm:$0xf]
    %v2033 = vld [vmem:[%s2029 + $0xc] sm:$0xf]
    %v2034 = vld [vmem:[%s2029 + $0x10] sm:$0xf]
    %v2035 = vld [vmem:[%s2029 + $0x14] sm:$0xf]
    %v2036 = vld [vmem:[%s2029 + $0x18] sm:$0xf]
    %v2037 = vld [vmem:[%s2029 + $0x1c] sm:$0xf]
    %v2038 = vld [vmem:[%s2029 + $0x20] sm:$0xf]
    %v2039 = vld [vmem:[%s2029 + $0x24] sm:$0xf]
    %v2040 = vld [vmem:[%s2029 + $0x28] sm:$0xf]
    %v2041 = vld [vmem:[%s2029 + $0x2c] sm:$0xf]
    %v2042 = vld [vmem:[%s2029 + $0x30] sm:$0xf]
    %v2043 = vld [vmem:[%s2029 + $0x34] sm:$0xf]
    %v2044 = vld [vmem:[%s2029 + $0x38] sm:$0xf]
    %v2045 = vld [vmem:[%s2029 + $0x3c] sm:$0xf]
    %v2046 = vld [vmem:[%s2029 + $0x40] sm:$0xf]
    %v2047 = vld [vmem:[%s2029 + $0x44] sm:$0xf]
    %v2048 = vld [vmem:[%s2029 + $0x48] sm:$0xf]
    %v2049 = vld [vmem:[%s2029 + $0x4c] sm:$0xf]
    %v2050 = vld [vmem:[%s2029 + $0x50] sm:$0xf]
    %v2051 = vld [vmem:[%s2029 + $0x54] sm:$0xf]
    %v2052 = vld [vmem:[%s2029 + $0x58] sm:$0xf]
    %v2053 = vld [vmem:[%s2029 + $0x5c] sm:$0xf]
    %v2054 = vld [vmem:[%s2029 + $0x60] sm:$0xf]
    %v2055 = vld [vmem:[%s2029 + $0x64] sm:$0xf]
    %v2056 = vld [vmem:[%s2029 + $0x68] sm:$0xf]
    %v2057 = vld [vmem:[%s2029 + $0x6c] sm:$0xf]
    %v2058 = vld [vmem:[%s2029 + $0x70] sm:$0xf]
    %v2059 = vld [vmem:[%s2029 + $0x74] sm:$0xf]
    %v2060 = vld [vmem:[%s2029 + $0x78] sm:$0xf]
    %v2061 = vld [vmem:[%s2029 + $0x7c] sm:$0xf]
    %s2062 = scalar_lea.vmem [#allocation22], 1
    %v2063 = vld [vmem:[%s2062] sm:$0x1]
    %v2065 = vlaneseq
    %v2066 = vshrl.u32 %v2065, 7
    %v2067 = vsub.s32 0, %v2066
    %v2068 = vrot.slane %v2063, %v2067
    %v2102 = vunpack.c.l.b16 %v2030
    %v2103 = vunpack.c.l.b16 %v2031
    %v2104 = vunpack.c.l.b16 %v2032
    %v2105 = vunpack.c.l.b16 %v2033
    %v2106 = vunpack.c.l.b16 %v2034
    %v2107 = vunpack.c.l.b16 %v2035
    %v2108 = vunpack.c.l.b16 %v2036
    %v2109 = vunpack.c.l.b16 %v2037
    %v2110 = vunpack.c.l.b16 %v2038
    %v2111 = vunpack.c.l.b16 %v2039
    %v2112 = vunpack.c.l.b16 %v2040
    %v2113 = vunpack.c.l.b16 %v2041
    %v2114 = vunpack.c.l.b16 %v2042
    %v2115 = vunpack.c.l.b16 %v2043
    %v2116 = vunpack.c.l.b16 %v2044
    %v2117 = vunpack.c.l.b16 %v2045
    %v2118 = vunpack.c.l.b16 %v2046
    %v2119 = vunpack.c.l.b16 %v2047
    %v2120 = vunpack.c.l.b16 %v2048
    %v2121 = vunpack.c.l.b16 %v2049
    %v2122 = vunpack.c.l.b16 %v2050
    %v2123 = vunpack.c.l.b16 %v2051
    %v2124 = vunpack.c.l.b16 %v2052
    %v2125 = vunpack.c.l.b16 %v2053
    %v2126 = vunpack.c.l.b16 %v2054
    %v2127 = vunpack.c.l.b16 %v2055
    %v2128 = vunpack.c.l.b16 %v2056
    %v2129 = vunpack.c.l.b16 %v2057
    %v2130 = vunpack.c.l.b16 %v2058
    %v2131 = vunpack.c.l.b16 %v2059
    %v2132 = vunpack.c.l.b16 %v2060
    %v2133 = vunpack.c.l.b16 %v2061
    %v2134 = vpack.c.b16 %v2103, %v2102
    %v2135 = vpack.c.b16 %v2105, %v2104
    %v2136 = vpack.c.b16 %v2107, %v2106
    %v2137 = vpack.c.b16 %v2109, %v2108
    %v2138 = vpack.c.b16 %v2111, %v2110
    %v2139 = vpack.c.b16 %v2113, %v2112
    %v2140 = vpack.c.b16 %v2115, %v2114
    %v2141 = vpack.c.b16 %v2117, %v2116
    %v2142 = vpack.c.b16 %v2119, %v2118
    %v2143 = vpack.c.b16 %v2121, %v2120
    %v2144 = vpack.c.b16 %v2123, %v2122
    %v2145 = vpack.c.b16 %v2125, %v2124
    %v2146 = vpack.c.b16 %v2127, %v2126
    %v2147 = vpack.c.b16 %v2129, %v2128
    %v2148 = vpack.c.b16 %v2131, %v2130
    %v2149 = vpack.c.b16 %v2133, %v2132
    %2166 = vmatprep.subr.bf16.mxu0 0
    %2167 = vmatpush1.bf16.msra.mxu0 %v2134
    %2168 = vmatprep.subr.bf16.mxu0 0
    %2169 = vmatpush1.bf16.msra.mxu0 %v2135
    %2170 = vmatprep.subr.bf16.mxu0 0
    %2171 = vmatpush1.bf16.msra.mxu0 %v2136
    %2172 = vmatprep.subr.bf16.mxu0 0
    %2173 = vmatpush1.bf16.msra.mxu0 %v2137
    %2174 = vmatprep.subr.bf16.mxu0 0
    %2175 = vmatpush1.bf16.msra.mxu0 %v2138
    %2176 = vmatprep.subr.bf16.mxu0 0
    %2177 = vmatpush1.bf16.msra.mxu0 %v2139
    %2178 = vmatprep.subr.bf16.mxu0 0
    %2179 = vmatpush1.bf16.msra.mxu0 %v2140
    %2180 = vmatprep.subr.bf16.mxu0 0
    %2181 = vmatpush1.bf16.msra.mxu0 %v2141
    %2182 = vmatprep.subr.bf16.mxu0 0
    %2183 = vmatpush1.bf16.msra.mxu0 %v2142
    %2184 = vmatprep.subr.bf16.mxu0 0
    %2185 = vmatpush1.bf16.msra.mxu0 %v2143
    %2186 = vmatprep.subr.bf16.mxu0 0
    %2187 = vmatpush1.bf16.msra.mxu0 %v2144
    %2188 = vmatprep.subr.bf16.mxu0 0
    %2189 = vmatpush1.bf16.msra.mxu0 %v2145
    %2190 = vmatprep.subr.bf16.mxu0 0
    %2191 = vmatpush1.bf16.msra.mxu0 %v2146
    %2192 = vmatprep.subr.bf16.mxu0 0
    %2193 = vmatpush1.bf16.msra.mxu0 %v2147
    %2194 = vmatprep.subr.bf16.mxu0 0
    %2195 = vmatpush1.bf16.msra.mxu0 %v2148
    %2196 = vmatprep.subr.bf16.mxu0 0
    %2197 = vmatpush1.bf16.msra.mxu0 %v2149
    %2198 = vmatprep.mubr.bf16.mxu0 %v2028
    %2199 = vmatmul.mubr.bf16.gmra.mrb[0].mxu0 %v2027
    %v2200 = vpop.f32.mrb[0].mxu0
    %v2201 = vadd.f32 %v2068, %v2200
    %v2202 = vpop.f32.mrb[0].mxu0
    %v2203 = vpop.f32.mrb[0].mxu0
    %v2204 = vadd.f32 %v2068, %v2203
    %v2205 = vpop.f32.mrb[0].mxu0
    %2206 = vdwg.mxu0
    %v2207 = vadd.f32 %v1867, %v2201
    %v2208 = vadd.f32 %v1868, %v2204
    %s2209 = scalar_lea.vmem [#allocation14], 1
    %v2210 = vld [vmem:[%s2209] sm:$0x1]
    %s2211 = scalar_lea.vmem [#allocation16], 1
    %v2212 = vld [vmem:[%s2211] sm:$0x1]
    %2213 = vadd.xlane.f32.xlu0 %v2207
    %v2214 = vpop.xlane.xlu0 %2213
    %2215 = vadd.xlane.f32.xlu0 %v2208
    %v2216 = vpop.xlane.xlu0 %2215
    %v2217 = vmul.f32 %v2214, %v863
    %v2218 = vmul.f32 %v2216, %v863
    %v2219 = vsub.f32 %v2207, %v2217
    %v2220 = vsub.f32 %v2208, %v2218
    %v2221 = vmul.f32 %v2219, %v2219
    %v2222 = vmul.f32 %v2220, %v2220
    %2223 = vadd.xlane.f32.xlu0 %v2221
    %v2224 = vpop.xlane.xlu0 %2223
    %2225 = vadd.xlane.f32.xlu0 %v2222
    %v2226 = vpop.xlane.xlu0 %2225
    %v2227 = vmul.f32 %v2224, %v863
    %v2228 = vmul.f32 %v2226, %v863
    %v2229 = vadd.f32 %v2227, 1e-05
    %v2230 = vadd.f32 %v2228, 1e-05
    %v2231 = vrsqrt.pop %v2229
    %v2232 = vrsqrt.pop %v2230
    %v2233 = vmul.f32 %v2219, %v2231
    %v2234 = vmul.f32 %v2220, %v2232
    %v2236 = vlaneseq
    %v2237 = vshrl.u32 %v2236, 7
    %v2238 = vsub.s32 0, %v2237
    %v2239 = vrot.slane %v2210, %v2238
    %v2241 = vmul.f32 %v2233, %v2239
    %v2242 = vmul.f32 %v2234, %v2239
    %v2244 = vlaneseq
    %v2245 = vshrl.u32 %v2244, 7
    %v2246 = vsub.s32 0, %v2245
    %v2247 = vrot.slane %v2212, %v2246
    %v2249 = vadd.f32 %v2241, %v2247
    %v2250 = vadd.f32 %v2242, %v2247
    %v2251 = vld [vmem:[%s16] sm:$0xf]
    %v2252 = vld [vmem:[%s16 + $0x4] sm:$0xf]
    %v2253 = vld [vmem:[%s16 + $0x8] sm:$0xf]
    %v2254 = vld [vmem:[%s16 + $0xc] sm:$0xf]
    %v2255 = vld [vmem:[%s16 + $0x10] sm:$0xf]
    %v2256 = vld [vmem:[%s16 + $0x14] sm:$0xf]
    %v2257 = vld [vmem:[%s16 + $0x18] sm:$0xf]
    %v2258 = vld [vmem:[%s16 + $0x1c] sm:$0xf]
    %v2267 = vunpack.c.l.b16 %v2251
    %v2268 = vunpack.c.l.b16 %v2252
    %v2269 = vunpack.c.l.b16 %v2253
    %v2270 = vunpack.c.l.b16 %v2254
    %v2271 = vunpack.c.l.b16 %v2255
    %v2272 = vunpack.c.l.b16 %v2256
    %v2273 = vunpack.c.l.b16 %v2257
    %v2274 = vunpack.c.l.b16 %v2258
    %v2275 = vpack.c.b16 %v2268, %v2267
    %v2276 = vpack.c.b16 %v2270, %v2269
    %v2277 = vpack.c.b16 %v2272, %v2271
    %v2278 = vpack.c.b16 %v2274, %v2273
    %2283 = vmatprep.subr.bf16.mxu0 0
    %2284 = vmatpush1.bf16.msra.mxu0 %v2275
    %2285 = vmatprep.subr.bf16.mxu0 0
    %2286 = vmatpush1.bf16.msra.mxu0 %v2276
    %2287 = vmatprep.subr.bf16.mxu0 0
    %2288 = vmatpush1.bf16.msra.mxu0 %v2277
    %2289 = vmatprep.subr.bf16.mxu0 0
    %2290 = vmatpush1.bf16.msra.mxu0 %v2278
    %2291 = vmatprep.subr.bf16.mxu0 0
    %2292 = vmatpush1.bf16.msra.mxu0 0
    %2293 = vmatprep.subr.bf16.mxu0 0
    %2294 = vmatpush1.bf16.msra.mxu0 0
    %2295 = vmatprep.subr.bf16.mxu0 0
    %2296 = vmatpush1.bf16.msra.mxu0 0
    %2297 = vmatprep.subr.bf16.mxu0 0
    %2298 = vmatpush1.bf16.msra.mxu0 0
    %2299 = vmatprep.subr.bf16.mxu0 0
    %2300 = vmatpush1.bf16.msra.mxu0 0
    %2301 = vmatprep.subr.bf16.mxu0 0
    %2302 = vmatpush1.bf16.msra.mxu0 0
    %2303 = vmatprep.subr.bf16.mxu0 0
    %2304 = vmatpush1.bf16.msra.mxu0 0
    %2305 = vmatprep.subr.bf16.mxu0 0
    %2306 = vmatpush1.bf16.msra.mxu0 0
    %2307 = vmatprep.subr.bf16.mxu0 0
    %2308 = vmatpush1.bf16.msra.mxu0 0
    %2309 = vmatprep.subr.bf16.mxu0 0
    %2310 = vmatpush1.bf16.msra.mxu0 0
    %2311 = vmatprep.subr.bf16.mxu0 0
    %2312 = vmatpush1.bf16.msra.mxu0 0
    %2313 = vmatprep.subr.bf16.mxu0 0
    %2314 = vmatpush1.bf16.msra.mxu0 0
    %2315 = vmatprep.mubr.bf16.mxu0 0
    %2316 = vmatmul.mubr.bf16.gmra.mrb[0].mxu0 %v1667
    %v2317 = vpop.f32.mrb[0].mxu0
    %v2318 = vadd.f32 0.0, %v2317
    %v2319 = vpop.f32.mrb[0].mxu0
    %v2320 = vpop.f32.mrb[0].mxu0
    %v2321 = vadd.f32 0.0, %v2320
    %v2322 = vpop.f32.mrb[0].mxu0
    %2323 = vdwg.mxu0
    %2324 = vst [vmem:[%s18] sm:$0xff] %v2318
    %2325 = vst [vmem:[%s18 + $0x8] sm:$0xff] %v2321
    %2326 = vst [vmem:[#allocation26] sm:$0xff] %v2249
    %2327 = vst [vmem:[#allocation26 + $0x8] sm:$0xff] %v2250
    // Predicated region
    $region130: #{encoder.1} parent=1 // pred_check
      _
    $region131: #{encoder.1} parent=1 // pred_check_branch
      %2329 = sbr.rel (0) target = $region133
    $region132: #{encoder.1} parent=1 // pred_region
      %s2331 = ssub.s32 256, 256
      %2332 = vsyncadd [#allocation4], %s2331
      %s2333 = sshll.u32 [#allocation26], 4
      %s2334 = int_to_ptr.vmem [resolvable:$true] %s2333
      %2339 = dma.vmem_to_hbm [thread:$0]  %s2334, 256, %s17, [#allocation4], 128, 128, 8
    $region133: #{encoder.1} parent=1 // pred_fallthru
      _
    // Predicated region
    $region134: #{encoder.1} parent=1 // pred_check
      _
    $region135: #{encoder.1} parent=1 // pred_check_branch
      %2341 = sbr.rel (0) target = $region137
    $region136: #{encoder.1} parent=1 // pred_region
      _
    $region137: #{encoder.1} parent=1 // pred_fallthru
      _
    // Predicated region
    $region138: #{encoder.1} parent=1 // pred_check
      _
    $region139: #{encoder.1} parent=1 // pred_check_branch
      %2343 = sbr.rel (0) target = $region141
    $region140: #{encoder.1} parent=1 // pred_region
      %2344 = dma.done [#allocation4], 256
    $region141: #{encoder.1} parent=1 // pred_fallthru
      _
    // Predicated region
    $region142: #{encoder.1} parent=1 // pred_check
      _
    $region143: #{encoder.1} parent=1 // pred_check_branch
      %2346 = sbr.rel (0) target = $region145
    $region144: #{encoder.1} parent=1 // pred_region
      _
    $region145: #{encoder.1} parent=1 // pred_fallthru
      _
    %2347 = vsyncpa [#allocation3], 1
    %2348 = vsyncpa [#allocation6], 1
    %2349 = vsyncpa [#allocation9], 1
    %2350 = vsyncpa [#allocation12], 1
    %2351 = vsyncpa [#allocation15], 1
    %2352 = vsyncpa [#allocation18], 1
    %2353 = vsyncpa [#allocation21], 1
    %2354 = vsyncpa [#allocation24], 1
    %2355 = vsyncpa [#allocation4], 1

</llo_original>
